<compile_context>
chip_gen: v6e
topology: v6e:2x2x1
jax: 0.10.0
libtpu: 0.0.40
codegen_flags: <defaults>
</compile_context>

<pallas_src>
import functools

import jax
import jax.numpy as jnp
import numpy as np
from jax.experimental import pallas as pl
from jax.experimental.pallas import tpu as pltpu


def _mhsa_kernel(xq_ref, xkv_ref, wq_ref, bq_ref, wkv_ref, bkv_ref,
                 wo_ref, bo_ref, o_ref, k_sc, v_sc, attn_sc,
                 *, head, head_dim):
    f = head * head_dim

    # K/V projection for the whole sequence: compute once per batch item
    # (first query tile) and keep resident in VMEM scratch for all later
    # query tiles of this batch element.
    @pl.when(pl.program_id(1) == 0)
    def _():
        kv = jnp.dot(xkv_ref[0], wkv_ref[...],
                     preferred_element_type=jnp.float32) + bkv_ref[...]   # (N, 2F) f32
        k_sc[...] = kv[:, :f].astype(jnp.bfloat16)
        v_sc[...] = kv[:, f:].astype(jnp.bfloat16)

    # Q projection for this query tile. 1/sqrt(feats) already folded into wq/bq.
    q = (jnp.dot(xq_ref[0], wq_ref[...],
                 preferred_element_type=jnp.float32) + bq_ref[...]).astype(jnp.bfloat16)

    # Static per-head loop (H is small). Slices are static; results go into the
    # preallocated (TQ, F) scratch slab so the HBM store is one full-width slab.
    for h in range(head):
        lo = h * head_dim
        hi = lo + head_dim
        q_h = q[:, lo:hi]                      # (TQ, D) bf16
        k_h = k_sc[:, lo:hi]                   # (N,  D) bf16
        v_h = v_sc[:, lo:hi]                   # (N,  D) bf16

        # Contract over the last dim of both operands (no K^T relayout).
        s = jax.lax.dot_general(q_h, k_h, (((1,), (1,)), ((), ())),
                                preferred_element_type=jnp.float32)       # (TQ, N) f32
        m = jnp.max(s, axis=-1, keepdims=True)
        p = jnp.exp((s - m).astype(jnp.bfloat16))                         # EUP, bf16
        l = jnp.sum(p.astype(jnp.float32), axis=-1, keepdims=True)        # (TQ, 1) f32

        # Unnormalized PV matmul; normalization deferred to the (TQ, D) output.
        o_h = jnp.dot(p, v_h, preferred_element_type=jnp.float32)         # (TQ, D) f32
        o_h = o_h * pl.reciprocal(l, approx=True)
        attn_sc[:, lo:hi] = o_h.astype(jnp.bfloat16)

    # Fused (block-diagonal) output projection, full-width lane-dense store.
    out = jnp.dot(attn_sc[...], wo_ref[...],
                  preferred_element_type=jnp.float32) + bo_ref[...]       # (TQ, F) f32
    o_ref[0] = out.astype(o_ref.dtype)


def _block_diag(w):
    """(H, D_in, D_out) per-head weights -> (H*D_in, H*D_out) block-diagonal."""
    h, d_in, d_out = w.shape
    eye = jnp.eye(h, dtype=w.dtype)
    t = w[:, :, None, :] * eye[:, None, :, None]   # (H, D_in, H, D_out)
    return t.reshape(h * d_in, h * d_out)


def _pick_query_tile(n):
    """Largest query tile (multiple of 8, <= 512) that divides N, else N."""
    for cand in (512, 256, 128, 64, 32, 16, 8):
        if cand <= n and n % cand == 0:
            return cand
    return n


def _vmem_estimate_bytes(n, tq, f):
    """Rough VMEM footprint: resident weights + scratch + buffers + f32 temps."""
    weights = 4 * f * f * 2 + 4 * f * 4                  # bf16 W's + f32 biases
    pipelined = 2 * (tq * f * 2) * 2 + 2 * (n * f * 2)   # xq/out dbl-buf + xkv
    scratch = 2 * n * f * 2 + tq * f * 2                 # k_sc, v_sc, attn slab
    temps = 8 * n * f + 16 * tq * f + 10 * tq * n        # qkv/q f32, score tile
    return weights + pipelined + scratch + temps


def multi_head_self_attention(x, params, feats):
    """x: (B, N, H, D) float32. params: dict of stacked per-head weights.

    Returns (B, N, H, D) float32, matching the PyTorch module output.
    """
    b, n, h, d = x.shape
    f = h * d
    inv_sqrt_d = 1.0 / (float(feats) ** 0.5)
    tq = _pick_query_tile(n)
    nq = n // tq

    # Contiguous flatten (no transpose) + bf16 cast so the x DMA is half-width.
    x_flat = x.reshape(b, n, f).astype(jnp.bfloat16)

    # One-time parameter transform (precomputed once in a real model):
    #  * fold 1/sqrt(feats) into the Q weights/bias,
    #  * fuse per-head linears into block-diagonal matrices (fine for tiny D;
    #    for D >= 64 prefer stacked (H, D, .) head-batched weights instead).
    wq = _block_diag(params["wq"] * inv_sqrt_d).astype(jnp.bfloat16)             # (F, F)
    bq = (params["bq"] * inv_sqrt_d).reshape(1, f)                               # (1, F) f32
    wkv = jnp.concatenate([_block_diag(params["wk"]),
                           _block_diag(params["wv"])], axis=1).astype(jnp.bfloat16)  # (F, 2F)
    bkv = jnp.concatenate([params["bk"].reshape(1, f),
                           params["bv"].reshape(1, f)], axis=1)                  # (1, 2F) f32
    wo = _block_diag(params["wo"]).astype(jnp.bfloat16)                          # (F, F)
    bo = params["bo"].reshape(1, f)                                              # (1, F) f32

    xq_spec = pl.BlockSpec((1, tq, f), lambda bi, qi: (bi, qi, 0))
    xkv_spec = pl.BlockSpec((1, n, f), lambda bi, qi: (bi, 0, 0))   # re-DMA'd only when bi changes
    # Constant index_maps -> weights/biases DMA'd once, VMEM-resident for the grid.
    wq_spec = pl.BlockSpec((f, f), lambda bi, qi: (0, 0))
    bq_spec = pl.BlockSpec((1, f), lambda bi, qi: (0, 0))
    wkv_spec = pl.BlockSpec((f, 2 * f), lambda bi, qi: (0, 0))
    bkv_spec = pl.BlockSpec((1, 2 * f), lambda bi, qi: (0, 0))
    wo_spec = pl.BlockSpec((f, f), lambda bi, qi: (0, 0))
    bo_spec = pl.BlockSpec((1, f), lambda bi, qi: (0, 0))
    o_spec = pl.BlockSpec((1, tq, f), lambda bi, qi: (bi, qi, 0))

    vmem_limit = int(min(max(2 * _vmem_estimate_bytes(n, tq, f), 16 * 1024 * 1024),
                         40 * 1024 * 1024))

    out_flat = pl.pallas_call(
        functools.partial(_mhsa_kernel, head=h, head_dim=d),
        out_shape=jax.ShapeDtypeStruct((b, n, f), jnp.bfloat16),
        grid_spec=pltpu.PrefetchScalarGridSpec(
            num_scalar_prefetch=0,
            grid=(b, nq),
            in_specs=[xq_spec, xkv_spec, wq_spec, bq_spec,
                      wkv_spec, bkv_spec, wo_spec, bo_spec],
            out_specs=o_spec,
            scratch_shapes=[
                pltpu.VMEM((n, f), jnp.bfloat16),   # K (full sequence, per batch)
                pltpu.VMEM((n, f), jnp.bfloat16),   # V
                pltpu.VMEM((tq, f), jnp.bfloat16),  # per-tile attention slab
            ]),
        # qi must be "arbitrary": the K/V scratch computed at qi == 0 is reused
        # sequentially across query tiles of the same batch element.
        compiler_params=pltpu.CompilerParams(
            dimension_semantics=("parallel", "arbitrary"),
            vmem_limit_bytes=vmem_limit),
    )(x_flat, x_flat, wq, bq, wkv, bkv, wo, bo)

    # Upcast + free contiguous reshape back to the module's (B, N, H, D) layout.
    return out_flat.astype(jnp.float32).reshape(b, n, h, d)


def _reference(x, params, feats):
    """Pure-JAX f32 reference reproducing the PyTorch forward."""
    sqrt_d = float(feats) ** 0.5
    q = jnp.einsum("bnhd,hdf->bnhf", x, params["wq"]) + params["bq"][None, None]
    k = jnp.einsum("bnhd,hdf->bnhf", x, params["wk"]) + params["bk"][None, None]
    v = jnp.einsum("bnhd,hdf->bnhf", x, params["wv"]) + params["bv"][None, None]
    q = jnp.transpose(q, (0, 2, 1, 3))  # (B, H, N, D)
    k = jnp.transpose(k, (0, 2, 1, 3))
    v = jnp.transpose(v, (0, 2, 1, 3))
    score = jax.nn.softmax(jnp.einsum("bhif,bhjf->bhij", q, k) / sqrt_d, axis=-1)
    attn = jnp.einsum("bhij,bhjf->bihf", score, v)  # (B, N, H, D)
    out = jnp.einsum("bnhd,hdf->bnhf", attn, params["wo"]) + params["bo"][None, None]
    return out


def init_params(key, head, head_dim):
    """Deterministic per-head Linear params (PyTorch-style uniform init)."""
    bound = 1.0 / (head_dim ** 0.5)
    keys = jax.random.split(key, 8)
    u = lambda k, shape: jax.random.uniform(k, shape, jnp.float32, -bound, bound)
    # weights stored pre-transposed as (H, in, out) so y = x @ W
    return {
        "wq": u(keys[0], (head, head_dim, head_dim)),
        "bq": u(keys[1], (head, head_dim)),
        "wk": u(keys[2], (head, head_dim, head_dim)),
        "bk": u(keys[3], (head, head_dim)),
        "wv": u(keys[4], (head, head_dim, head_dim)),
        "bv": u(keys[5], (head, head_dim)),
        "wo": u(keys[6], (head, head_dim, head_dim)),
        "bo": u(keys[7], (head, head_dim)),
    }


if __name__ == "__main__":
    # small shapes consistent with the module's forward: x is (b, n, head, head_dim)
    B, N, HEAD, HEAD_DIM = 2, 8, 4, 8
    FEATS = HEAD * HEAD_DIM  # 32; sqrt_d uses full feats as in the PyTorch code

    key = jax.random.PRNGKey(0)
    kx, kp = jax.random.split(key)
    x = jax.random.normal(kx, (B, N, HEAD, HEAD_DIM), dtype=jnp.float32)
    params = init_params(kp, HEAD, HEAD_DIM)

    out = jax.block_until_ready(multi_head_self_attention(x, params, FEATS))
    ref = jax.block_until_ready(_reference(x, params, FEATS))

    # Tolerance relaxed for bf16 MXU inputs/writeback, bf16 exp, approx reciprocal.
    np.testing.assert_allclose(np.asarray(out), np.asarray(ref), rtol=5e-2, atol=5e-2)

    print("KERNEL_OK")
</pallas_src>

<mosaic_0001>
module attributes {stable_mosaic.version = 11 : i64} {
  func.func @_mhsa_kernel(%arg0: i32, %arg1: i32, %arg2: memref<1x8x32xbf16, #tpu.memory_space<vmem>>, %arg3: memref<1x8x32xbf16, #tpu.memory_space<vmem>>, %arg4: memref<32x32xbf16, #tpu.memory_space<vmem>>, %arg5: memref<1x32xf32, #tpu.memory_space<vmem>>, %arg6: memref<32x64xbf16, #tpu.memory_space<vmem>>, %arg7: memref<1x64xf32, #tpu.memory_space<vmem>>, %arg8: memref<32x32xbf16, #tpu.memory_space<vmem>>, %arg9: memref<1x32xf32, #tpu.memory_space<vmem>>, %arg10: memref<1x8x32xbf16, #tpu.memory_space<vmem>>, %arg11: memref<8x32xbf16, #tpu.memory_space<vmem>>, %arg12: memref<8x32xbf16, #tpu.memory_space<vmem>>, %arg13: memref<8x32xbf16, #tpu.memory_space<vmem>>) attributes {dimension_semantics = [#tpu.dimension_semantics<parallel>, #tpu.dimension_semantics<arbitrary>], iteration_bounds = array<i64: 2, 1>, scalar_prefetch = 0 : i64, scratch_operands = 3 : i64, tpu.core_type = #tpu.core_type<tc>, window_params = [{transform_indices = @transform_0, window_bounds = array<i64: 1, 8, 32>}, {transform_indices = @transform_1, window_bounds = array<i64: 1, 8, 32>}, {pipeline_mode = #tpu.pipeline_mode<synchronous>, transform_indices = @transform_2, window_bounds = array<i64: 32, 32>}, {pipeline_mode = #tpu.pipeline_mode<synchronous>, transform_indices = @transform_3, window_bounds = array<i64: 1, 32>}, {pipeline_mode = #tpu.pipeline_mode<synchronous>, transform_indices = @transform_4, window_bounds = array<i64: 32, 64>}, {pipeline_mode = #tpu.pipeline_mode<synchronous>, transform_indices = @transform_5, window_bounds = array<i64: 1, 64>}, {pipeline_mode = #tpu.pipeline_mode<synchronous>, transform_indices = @transform_6, window_bounds = array<i64: 32, 32>}, {pipeline_mode = #tpu.pipeline_mode<synchronous>, transform_indices = @transform_7, window_bounds = array<i64: 1, 32>}, {transform_indices = @transform_8, window_bounds = array<i64: 1, 8, 32>}]} {
    %c0_i32 = arith.constant 0 : i32
    %0 = arith.cmpi eq, %arg1, %c0_i32 : i32
    %1 = arith.extui %0 : i1 to i32
    %c0_i32_0 = arith.constant 0 : i32
    %2 = arith.cmpi ne, %1, %c0_i32_0 : i32
    scf.if %2 {
      %c0_54 = arith.constant 0 : index
      %c0_55 = arith.constant 0 : index
      %c0_56 = arith.constant 0 : index
      %97 = vector.load %arg3[%c0_54, %c0_55, %c0_56] : memref<1x8x32xbf16, #tpu.memory_space<vmem>>, vector<1x8x32xbf16>
      %98 = vector.shape_cast %97 : vector<1x8x32xbf16> to vector<8x32xbf16>
      %c0_57 = arith.constant 0 : index
      %c0_58 = arith.constant 0 : index
      %99 = vector.load %arg6[%c0_57, %c0_58] : memref<32x64xbf16, #tpu.memory_space<vmem>>, vector<32x64xbf16>
      %cst_59 = arith.constant dense<0.000000e+00> : vector<8x64xf32>
      %100 = tpu.matmul %98, %99, %cst_59 {dimension_numbers = #tpu.dot_dimension_numbers<[1], [0], [0], [1], [0, 0, 1, 1], [], []>} : vector<8x32xbf16>, vector<32x64xbf16>, vector<8x64xf32> -> vector<8x64xf32>
      %c0_60 = arith.constant 0 : index
      %c0_61 = arith.constant 0 : index
      %101 = vector.load %arg7[%c0_60, %c0_61] : memref<1x64xf32, #tpu.memory_space<vmem>>, vector<1x64xf32>
      %102 = vector.broadcast %101 : vector<1x64xf32> to vector<8x64xf32>
      %103 = arith.addf %100, %102 : vector<8x64xf32>
      %104 = vector.extract_strided_slice %103 {offsets = [0, 0], sizes = [8, 32], strides = [1, 1]} : vector<8x64xf32> to vector<8x32xf32>
      %105 = arith.truncf %104 : vector<8x32xf32> to vector<8x32xbf16>
      %c0_62 = arith.constant 0 : index
      %c0_63 = arith.constant 0 : index
      %106 = vector.load %arg11[%c0_62, %c0_63] : memref<8x32xbf16, #tpu.memory_space<vmem>>, vector<8x32xbf16>
      tpu.vector_store %arg11[%c0_62, %c0_63], %105 {strides = array<i32>} : memref<8x32xbf16, #tpu.memory_space<vmem>>, vector<8x32xbf16>,
      %107 = vector.extract_strided_slice %103 {offsets = [0, 32], sizes = [8, 32], strides = [1, 1]} : vector<8x64xf32> to vector<8x32xf32>
      %108 = arith.truncf %107 : vector<8x32xf32> to vector<8x32xbf16>
      %c0_64 = arith.constant 0 : index
      %c0_65 = arith.constant 0 : index
      %109 = vector.load %arg12[%c0_64, %c0_65] : memref<8x32xbf16, #tpu.memory_space<vmem>>, vector<8x32xbf16>
      tpu.vector_store %arg12[%c0_64, %c0_65], %108 {strides = array<i32>} : memref<8x32xbf16, #tpu.memory_space<vmem>>, vector<8x32xbf16>,
    } else {
    }
    %c0 = arith.constant 0 : index
    %c0_1 = arith.constant 0 : index
    %c0_2 = arith.constant 0 : index
    %3 = vector.load %arg2[%c0, %c0_1, %c0_2] : memref<1x8x32xbf16, #tpu.memory_space<vmem>>, vector<1x8x32xbf16>
    %4 = vector.shape_cast %3 : vector<1x8x32xbf16> to vector<8x32xbf16>
    %c0_3 = arith.constant 0 : index
    %c0_4 = arith.constant 0 : index
    %5 = vector.load %arg4[%c0_3, %c0_4] : memref<32x32xbf16, #tpu.memory_space<vmem>>, vector<32x32xbf16>
    %cst = arith.constant dense<0.000000e+00> : vector<8x32xf32>
    %6 = tpu.matmul %4, %5, %cst {dimension_numbers = #tpu.dot_dimension_numbers<[1], [0], [0], [1], [0, 0, 1, 1], [], []>} : vector<8x32xbf16>, vector<32x32xbf16>, vector<8x32xf32> -> vector<8x32xf32>
    %c0_5 = arith.constant 0 : index
    %c0_6 = arith.constant 0 : index
    %7 = vector.load %arg5[%c0_5, %c0_6] : memref<1x32xf32, #tpu.memory_space<vmem>>, vector<1x32xf32>
    %8 = vector.broadcast %7 : vector<1x32xf32> to vector<8x32xf32>
    %9 = arith.addf %6, %8 : vector<8x32xf32>
    %10 = arith.truncf %9 : vector<8x32xf32> to vector<8x32xbf16>
    %11 = vector.extract_strided_slice %10 {offsets = [0, 0], sizes = [8, 8], strides = [1, 1]} : vector<8x32xbf16> to vector<8x8xbf16>
    %c0_7 = arith.constant 0 : index
    %c0_8 = arith.constant 0 : index
    %12 = vector.load %arg11[%c0_7, %c0_8] : memref<8x32xbf16, #tpu.memory_space<vmem>>, vector<8x8xbf16>
    %c0_9 = arith.constant 0 : index
    %c0_10 = arith.constant 0 : index
    %13 = vector.load %arg12[%c0_9, %c0_10] : memref<8x32xbf16, #tpu.memory_space<vmem>>, vector<8x8xbf16>
    %cst_11 = arith.constant dense<0.000000e+00> : vector<8x8xf32>
    %14 = tpu.matmul %11, %12, %cst_11 {dimension_numbers = #tpu.dot_dimension_numbers<[1], [1], [0], [0], [0, 0, 1, 0], [], []>} : vector<8x8xbf16>, vector<8x8xbf16>, vector<8x8xf32> -> vector<8x8xf32>
    %cst_12 = arith.constant dense<0xFF800000> : vector<8xf32>
    %15 = vector.multi_reduction <maximumf>, %14, %cst_12 [1] : vector<8x8xf32> to vector<8xf32>
    %16 = vector.shape_cast %15 : vector<8xf32> to vector<8x1xf32>
    %17 = vector.broadcast %16 : vector<8x1xf32> to vector<8x8xf32>
    %18 = arith.subf %14, %17 : vector<8x8xf32>
    %19 = arith.truncf %18 : vector<8x8xf32> to vector<8x8xbf16>
    %20 = math.exp %19 : vector<8x8xbf16>
    %21 = arith.extf %20 : vector<8x8xbf16> to vector<8x8xf32>
    %cst_13 = arith.constant dense<0.000000e+00> : vector<8xf32>
    %22 = vector.multi_reduction <add>, %21, %cst_13 [1] : vector<8x8xf32> to vector<8xf32>
    %23 = vector.shape_cast %22 : vector<8xf32> to vector<8x1xf32>
    %cst_14 = arith.constant dense<0.000000e+00> : vector<8x8xf32>
    %24 = tpu.matmul %20, %13, %cst_14 {dimension_numbers = #tpu.dot_dimension_numbers<[1], [0], [0], [1], [0, 0, 1, 1], [], []>} : vector<8x8xbf16>, vector<8x8xbf16>, vector<8x8xf32> -> vector<8x8xf32>
    %25 = tpu.reciprocal %23 {approx = true} : vector<8x1xf32> -> vector<8x1xf32>
    %26 = vector.broadcast %25 : vector<8x1xf32> to vector<8x8xf32>
    %27 = arith.mulf %24, %26 : vector<8x8xf32>
    %28 = arith.truncf %27 : vector<8x8xf32> to vector<8x8xbf16>
    %c0_15 = arith.constant 0 : index
    %c0_16 = arith.constant 0 : index
    %29 = vector.load %arg13[%c0_15, %c0_16] : memref<8x32xbf16, #tpu.memory_space<vmem>>, vector<8x8xbf16>
    tpu.vector_store %arg13[%c0_15, %c0_16], %28 {strides = array<i32>} : memref<8x32xbf16, #tpu.memory_space<vmem>>, vector<8x8xbf16>,
    %30 = vector.extract_strided_slice %10 {offsets = [0, 8], sizes = [8, 8], strides = [1, 1]} : vector<8x32xbf16> to vector<8x8xbf16>
    %c0_17 = arith.constant 0 : index
    %c8 = arith.constant 8 : index
    %31 = vector.load %arg11[%c0_17, %c8] : memref<8x32xbf16, #tpu.memory_space<vmem>>, vector<8x8xbf16>
    %c0_18 = arith.constant 0 : index
    %c8_19 = arith.constant 8 : index
    %32 = vector.load %arg12[%c0_18, %c8_19] : memref<8x32xbf16, #tpu.memory_space<vmem>>, vector<8x8xbf16>
    %cst_20 = arith.constant dense<0.000000e+00> : vector<8x8xf32>
    %33 = tpu.matmul %30, %31, %cst_20 {dimension_numbers = #tpu.dot_dimension_numbers<[1], [1], [0], [0], [0, 0, 1, 0], [], []>} : vector<8x8xbf16>, vector<8x8xbf16>, vector<8x8xf32> -> vector<8x8xf32>
    %cst_21 = arith.constant dense<0xFF800000> : vector<8xf32>
    %34 = vector.multi_reduction <maximumf>, %33, %cst_21 [1] : vector<8x8xf32> to vector<8xf32>
    %35 = vector.shape_cast %34 : vector<8xf32> to vector<8x1xf32>
    %36 = vector.broadcast %35 : vector<8x1xf32> to vector<8x8xf32>
    %37 = arith.subf %33, %36 : vector<8x8xf32>
    %38 = arith.truncf %37 : vector<8x8xf32> to vector<8x8xbf16>
    %39 = math.exp %38 : vector<8x8xbf16>
    %40 = arith.extf %39 : vector<8x8xbf16> to vector<8x8xf32>
    %cst_22 = arith.constant dense<0.000000e+00> : vector<8xf32>
    %41 = vector.multi_reduction <add>, %40, %cst_22 [1] : vector<8x8xf32> to vector<8xf32>
    %42 = vector.shape_cast %41 : vector<8xf32> to vector<8x1xf32>
    %cst_23 = arith.constant dense<0.000000e+00> : vector<8x8xf32>
    %43 = tpu.matmul %39, %32, %cst_23 {dimension_numbers = #tpu.dot_dimension_numbers<[1], [0], [0], [1], [0, 0, 1, 1], [], []>} : vector<8x8xbf16>, vector<8x8xbf16>, vector<8x8xf32> -> vector<8x8xf32>
    %44 = tpu.reciprocal %42 {approx = true} : vector<8x1xf32> -> vector<8x1xf32>
    %45 = vector.broadcast %44 : vector<8x1xf32> to vector<8x8xf32>
    %46 = arith.mulf %43, %45 : vector<8x8xf32>
    %47 = arith.truncf %46 : vector<8x8xf32> to vector<8x8xbf16>
    %c0_24 = arith.constant 0 : index
    %c8_25 = arith.constant 8 : index
    %48 = vector.load %arg13[%c0_24, %c8_25] : memref<8x32xbf16, #tpu.memory_space<vmem>>, vector<8x8xbf16>
    tpu.vector_store %arg13[%c0_24, %c8_25], %47 {strides = array<i32>} : memref<8x32xbf16, #tpu.memory_space<vmem>>, vector<8x8xbf16>,
    %49 = vector.extract_strided_slice %10 {offsets = [0, 16], sizes = [8, 8], strides = [1, 1]} : vector<8x32xbf16> to vector<8x8xbf16>
    %c0_26 = arith.constant 0 : index
    %c16 = arith.constant 16 : index
    %50 = vector.load %arg11[%c0_26, %c16] : memref<8x32xbf16, #tpu.memory_space<vmem>>, vector<8x8xbf16>
    %c0_27 = arith.constant 0 : index
    %c16_28 = arith.constant 16 : index
    %51 = vector.load %arg12[%c0_27, %c16_28] : memref<8x32xbf16, #tpu.memory_space<vmem>>, vector<8x8xbf16>
    %cst_29 = arith.constant dense<0.000000e+00> : vector<8x8xf32>
    %52 = tpu.matmul %49, %50, %cst_29 {dimension_numbers = #tpu.dot_dimension_numbers<[1], [1], [0], [0], [0, 0, 1, 0], [], []>} : vector<8x8xbf16>, vector<8x8xbf16>, vector<8x8xf32> -> vector<8x8xf32>
    %cst_30 = arith.constant dense<0xFF800000> : vector<8xf32>
    %53 = vector.multi_reduction <maximumf>, %52, %cst_30 [1] : vector<8x8xf32> to vector<8xf32>
    %54 = vector.shape_cast %53 : vector<8xf32> to vector<8x1xf32>
    %55 = vector.broadcast %54 : vector<8x1xf32> to vector<8x8xf32>
    %56 = arith.subf %52, %55 : vector<8x8xf32>
    %57 = arith.truncf %56 : vector<8x8xf32> to vector<8x8xbf16>
    %58 = math.exp %57 : vector<8x8xbf16>
    %59 = arith.extf %58 : vector<8x8xbf16> to vector<8x8xf32>
    %cst_31 = arith.constant dense<0.000000e+00> : vector<8xf32>
    %60 = vector.multi_reduction <add>, %59, %cst_31 [1] : vector<8x8xf32> to vector<8xf32>
    %61 = vector.shape_cast %60 : vector<8xf32> to vector<8x1xf32>
    %cst_32 = arith.constant dense<0.000000e+00> : vector<8x8xf32>
    %62 = tpu.matmul %58, %51, %cst_32 {dimension_numbers = #tpu.dot_dimension_numbers<[1], [0], [0], [1], [0, 0, 1, 1], [], []>} : vector<8x8xbf16>, vector<8x8xbf16>, vector<8x8xf32> -> vector<8x8xf32>
    %63 = tpu.reciprocal %61 {approx = true} : vector<8x1xf32> -> vector<8x1xf32>
    %64 = vector.broadcast %63 : vector<8x1xf32> to vector<8x8xf32>
    %65 = arith.mulf %62, %64 : vector<8x8xf32>
    %66 = arith.truncf %65 : vector<8x8xf32> to vector<8x8xbf16>
    %c0_33 = arith.constant 0 : index
    %c16_34 = arith.constant 16 : index
    %67 = vector.load %arg13[%c0_33, %c16_34] : memref<8x32xbf16, #tpu.memory_space<vmem>>, vector<8x8xbf16>
    tpu.vector_store %arg13[%c0_33, %c16_34], %66 {strides = array<i32>} : memref<8x32xbf16, #tpu.memory_space<vmem>>, vector<8x8xbf16>,
    %68 = vector.extract_strided_slice %10 {offsets = [0, 24], sizes = [8, 8], strides = [1, 1]} : vector<8x32xbf16> to vector<8x8xbf16>
    %c0_35 = arith.constant 0 : index
    %c24 = arith.constant 24 : index
    %69 = vector.load %arg11[%c0_35, %c24] : memref<8x32xbf16, #tpu.memory_space<vmem>>, vector<8x8xbf16>
    %c0_36 = arith.constant 0 : index
    %c24_37 = arith.constant 24 : index
    %70 = vector.load %arg12[%c0_36, %c24_37] : memref<8x32xbf16, #tpu.memory_space<vmem>>, vector<8x8xbf16>
    %cst_38 = arith.constant dense<0.000000e+00> : vector<8x8xf32>
    %71 = tpu.matmul %68, %69, %cst_38 {dimension_numbers = #tpu.dot_dimension_numbers<[1], [1], [0], [0], [0, 0, 1, 0], [], []>} : vector<8x8xbf16>, vector<8x8xbf16>, vector<8x8xf32> -> vector<8x8xf32>
    %cst_39 = arith.constant dense<0xFF800000> : vector<8xf32>
    %72 = vector.multi_reduction <maximumf>, %71, %cst_39 [1] : vector<8x8xf32> to vector<8xf32>
    %73 = vector.shape_cast %72 : vector<8xf32> to vector<8x1xf32>
    %74 = vector.broadcast %73 : vector<8x1xf32> to vector<8x8xf32>
    %75 = arith.subf %71, %74 : vector<8x8xf32>
    %76 = arith.truncf %75 : vector<8x8xf32> to vector<8x8xbf16>
    %77 = math.exp %76 : vector<8x8xbf16>
    %78 = arith.extf %77 : vector<8x8xbf16> to vector<8x8xf32>
    %cst_40 = arith.constant dense<0.000000e+00> : vector<8xf32>
    %79 = vector.multi_reduction <add>, %78, %cst_40 [1] : vector<8x8xf32> to vector<8xf32>
    %80 = vector.shape_cast %79 : vector<8xf32> to vector<8x1xf32>
    %cst_41 = arith.constant dense<0.000000e+00> : vector<8x8xf32>
    %81 = tpu.matmul %77, %70, %cst_41 {dimension_numbers = #tpu.dot_dimension_numbers<[1], [0], [0], [1], [0, 0, 1, 1], [], []>} : vector<8x8xbf16>, vector<8x8xbf16>, vector<8x8xf32> -> vector<8x8xf32>
    %82 = tpu.reciprocal %80 {approx = true} : vector<8x1xf32> -> vector<8x1xf32>
    %83 = vector.broadcast %82 : vector<8x1xf32> to vector<8x8xf32>
    %84 = arith.mulf %81, %83 : vector<8x8xf32>
    %85 = arith.truncf %84 : vector<8x8xf32> to vector<8x8xbf16>
    %c0_42 = arith.constant 0 : index
    %c24_43 = arith.constant 24 : index
    %86 = vector.load %arg13[%c0_42, %c24_43] : memref<8x32xbf16, #tpu.memory_space<vmem>>, vector<8x8xbf16>
    tpu.vector_store %arg13[%c0_42, %c24_43], %85 {strides = array<i32>} : memref<8x32xbf16, #tpu.memory_space<vmem>>, vector<8x8xbf16>,
    %c0_44 = arith.constant 0 : index
    %c0_45 = arith.constant 0 : index
    %87 = vector.load %arg13[%c0_44, %c0_45] : memref<8x32xbf16, #tpu.memory_space<vmem>>, vector<8x32xbf16>
    %c0_46 = arith.constant 0 : index
    %c0_47 = arith.constant 0 : index
    %88 = vector.load %arg8[%c0_46, %c0_47] : memref<32x32xbf16, #tpu.memory_space<vmem>>, vector<32x32xbf16>
    %cst_48 = arith.constant dense<0.000000e+00> : vector<8x32xf32>
    %89 = tpu.matmul %87, %88, %cst_48 {dimension_numbers = #tpu.dot_dimension_numbers<[1], [0], [0], [1], [0, 0, 1, 1], [], []>} : vector<8x32xbf16>, vector<32x32xbf16>, vector<8x32xf32> -> vector<8x32xf32>
    %c0_49 = arith.constant 0 : index
    %c0_50 = arith.constant 0 : index
    %90 = vector.load %arg9[%c0_49, %c0_50] : memref<1x32xf32, #tpu.memory_space<vmem>>, vector<1x32xf32>
    %91 = vector.broadcast %90 : vector<1x32xf32> to vector<8x32xf32>
    %92 = arith.addf %89, %91 : vector<8x32xf32>
    %93 = arith.truncf %92 : vector<8x32xf32> to vector<8x32xbf16>
    %c0_51 = arith.constant 0 : index
    %c0_52 = arith.constant 0 : index
    %c0_53 = arith.constant 0 : index
    %94 = vector.load %arg10[%c0_51, %c0_52, %c0_53] : memref<1x8x32xbf16, #tpu.memory_space<vmem>>, vector<1x8x32xbf16>
    %95 = vector.shape_cast %94 : vector<1x8x32xbf16> to vector<8x32xbf16>
    %96 = vector.shape_cast %93 : vector<8x32xbf16> to vector<1x8x32xbf16>
    tpu.vector_store %arg10[%c0_51, %c0_52, %c0_53], %96 {strides = array<i32>} : memref<1x8x32xbf16, #tpu.memory_space<vmem>>, vector<1x8x32xbf16>,
    return
  }
  func.func @transform_0(%arg0: i32, %arg1: i32) -> (i32, i32, i32) {
    %c0_i32 = arith.constant 0 : i32
    %c0_i32_0 = arith.constant 0 : i32
    return %arg0, %arg1, %c0_i32 : i32, i32, i32
  }
  func.func @transform_1(%arg0: i32, %arg1: i32) -> (i32, i32, i32) {
    %c0_i32 = arith.constant 0 : i32
    %c0_i32_0 = arith.constant 0 : i32
    %c0_i32_1 = arith.constant 0 : i32
    return %arg0, %c0_i32, %c0_i32_0 : i32, i32, i32
  }
  func.func @transform_2(%arg0: i32, %arg1: i32) -> (i32, i32) {
    %c0_i32 = arith.constant 0 : i32
    %c0_i32_0 = arith.constant 0 : i32
    %c0_i32_1 = arith.constant 0 : i32
    return %c0_i32, %c0_i32_0 : i32, i32
  }
  func.func @transform_3(%arg0: i32, %arg1: i32) -> (i32, i32) {
    %c0_i32 = arith.constant 0 : i32
    %c0_i32_0 = arith.constant 0 : i32
    %c0_i32_1 = arith.constant 0 : i32
    return %c0_i32, %c0_i32_0 : i32, i32
  }
  func.func @transform_4(%arg0: i32, %arg1: i32) -> (i32, i32) {
    %c0_i32 = arith.constant 0 : i32
    %c0_i32_0 = arith.constant 0 : i32
    %c0_i32_1 = arith.constant 0 : i32
    return %c0_i32, %c0_i32_0 : i32, i32
  }
  func.func @transform_5(%arg0: i32, %arg1: i32) -> (i32, i32) {
    %c0_i32 = arith.constant 0 : i32
    %c0_i32_0 = arith.constant 0 : i32
    %c0_i32_1 = arith.constant 0 : i32
    return %c0_i32, %c0_i32_0 : i32, i32
  }
  func.func @transform_6(%arg0: i32, %arg1: i32) -> (i32, i32) {
    %c0_i32 = arith.constant 0 : i32
    %c0_i32_0 = arith.constant 0 : i32
    %c0_i32_1 = arith.constant 0 : i32
    return %c0_i32, %c0_i32_0 : i32, i32
  }
  func.func @transform_7(%arg0: i32, %arg1: i32) -> (i32, i32) {
    %c0_i32 = arith.constant 0 : i32
    %c0_i32_0 = arith.constant 0 : i32
    %c0_i32_1 = arith.constant 0 : i32
    return %c0_i32, %c0_i32_0 : i32, i32
  }
  func.func @transform_8(%arg0: i32, %arg1: i32) -> (i32, i32, i32) {
    %c0_i32 = arith.constant 0 : i32
    %c0_i32_0 = arith.constant 0 : i32
    return %arg0, %arg1, %c0_i32 : i32, i32, i32
  }
}

</mosaic_0001>

<llo_original>
// kernel: tpu_custom_call.1
$region0: #{tpu_custom_call.1}
  #allocation0 [shape = 'u32[]', space=smem, size = 0x4, offset = 0x4, fixed_abs, tag = 'smem constant byte address 0x4 - core index']
  #allocation1 [shape = 'u32[144,128]{1,0:T(1,128)}', space=vmem, size = 0x12000, scoped, tag = 'internal scratch']
  #allocation2 [shape = 'bf16[8,32]{1,0:T(8,128)(2,1)}', space=vmem, size = 0x800, scoped, tag = 'scratch operand']
  #allocation3 [shape = 'bf16[8,32]{1,0:T(8,128)(2,1)}', space=vmem, size = 0x800, scoped, tag = 'scratch operand']
  #allocation4 [shape = 'bf16[8,32]{1,0:T(8,128)(2,1)}', space=vmem, size = 0x800, scoped, tag = 'scratch operand']
  %s0 = inlined_call_operand.hbm [shape: bf16[2,8,32], index: 0, kind: input, shape index: {}]
  %s1 = inlined_call_operand.hbm [shape: bf16[2,8,32], index: 1, kind: input, shape index: {}]
  %s2 = inlined_call_operand.hbm [shape: bf16[32,32], index: 2, kind: input, shape index: {}]
  %s3 = inlined_call_operand.vmem [shape: f32[1,32], index: 3, kind: input, shape index: {}]
  %s4 = inlined_call_operand.hbm [shape: bf16[32,64], index: 4, kind: input, shape index: {}]
  %s5 = inlined_call_operand.vmem [shape: f32[1,64], index: 5, kind: input, shape index: {}]
  %s6 = inlined_call_operand.hbm [shape: bf16[32,32], index: 6, kind: input, shape index: {}]
  %s7 = inlined_call_operand.vmem [shape: f32[1,32], index: 7, kind: input, shape index: {}]
  %s8 = inlined_call_operand.hbm [shape: bf16[2,8,32], index: 8, kind: output, shape index: {}]
  %s9 = sld [smem:[#allocation0]]
  $region89: #{tpu_custom_call.1} parent=0
    _
  %s11 = ssub.s32 1, %s9
  %s12 = scalar_select 0, %s11, %s9
  $region1: #{tpu_custom_call.1} parent=0
    #allocation5 [shape = 'u8[4096]{0}', space=vmem, size = 0x1000, scoped, tag = 'input window, operand 0']
    #allocation6 [shape = 's32[2]{0}', space=sflag, size = 0x8, scoped, tag = 'scoped memory for tpu_custom_call.1']
    #allocation7 [shape = 's32[2]{0}', space=sflag, size = 0x8, scoped, tag = 'scoped memory for tpu_custom_call.1']
    #allocation8 [shape = 'u8[4096]{0}', space=vmem, size = 0x1000, scoped, tag = 'input window, operand 1']
    #allocation9 [shape = 's32[2]{0}', space=sflag, size = 0x8, scoped, tag = 'scoped memory for tpu_custom_call.1']
    #allocation10 [shape = 'u8[8192]{0}', space=vmem, size = 0x2000, scoped, tag = 'input window, operand 2, single buffered']
    #allocation11 [shape = 'u8[8192]{0}', space=vmem, size = 0x2000, scoped, tag = 'input window, operand 4, single buffered']
    #allocation12 [shape = 's32[1]{0}', space=sflag, size = 0x4, scoped, tag = 'scoped memory for tpu_custom_call.1']
    #allocation13 [shape = 'u8[8192]{0}', space=vmem, size = 0x2000, scoped, tag = 'input window, operand 6, single buffered']
    #allocation14 [shape = 'u8[4096]{0}', space=vmem, size = 0x1000, scoped, tag = 'output window, operand 0']
    %13 = vsyncpa [#allocation6], 0
    %s14 = scalar_lea.sflag [#allocation6], 1
    %15 = vsyncpa %s14, 0
    %16 = vsyncpa [#allocation9], 0
    %s17 = scalar_lea.sflag [#allocation9], 1
    %18 = vsyncpa %s17, 0
    %19 = vsyncpa [#allocation12], 0
    %20 = vsyncpa [#allocation7], 0
    %s21 = scalar_lea.sflag [#allocation7], 1
    %22 = vsyncpa %s21, 0
    loop: start=0, step=1, limit=4
    $region2: #{tpu_custom_call.1} parent=1 // loop_pre_header
      _
    $region3: #{tpu_custom_call.1} parent=1 // loop_header
      %s24 = sphi 0, %s28
      %p25 = scmp.ge.s32.totalorder %s24, 4
      %s31 = sphi 0, %s43
      %s32 = sphi 0, %s39
      %s33 = sphi 0, %s31
      %s34 = sphi 0, %s32
      %s35 = sphi 0, %s33
      %s36 = sphi 0, %s34
      %s48 = sphi 0, %s50
      %s51 = sphi 0, %s48
      %s52 = sphi 0, %s51
      %s68 = sphi 0, %s52
      %s74 = sphi 0, %s76
      %s77 = sphi 0, %s74
      %s78 = sphi 0, %s77
      %s94 = sphi 0, %s78
      %s98 = sphi 0, %s98
      %s100 = sphi 0, %s98
      %s101 = sphi 0, %s100
      %s115 = sphi 0, %s101
      %s119 = sphi 0, %s119
      %s121 = sphi 0, %s119
      %s122 = sphi 0, %s121
      %s136 = sphi 0, %s122
      %s140 = sphi 0, %s140
      %s142 = sphi 0, %s140
      %s143 = sphi 0, %s142
      %s157 = sphi 0, %s143
      %s161 = sphi 0, %s161
      %s163 = sphi 0, %s161
      %s164 = sphi 0, %s163
      %s178 = sphi 0, %s164
      %s182 = sphi 0, %s182
      %s184 = sphi 0, %s182
      %s185 = sphi 0, %s184
      %s199 = sphi 0, %s185
      %s203 = sphi 0, %s203
      %s205 = sphi 0, %s203
      %s206 = sphi 0, %s205
      %s220 = sphi 0, %s206
      %s228 = sphi 0, %s230
      %s231 = sphi 0, %s228
      %s232 = sphi 0, %s231
      %s248 = sphi 0, %s232
    $region4: #{tpu_custom_call.1} parent=1 // loop_header_branch
      %27 = sbr.rel (%p25) target = $region8
    $region5: #{tpu_custom_call.1} parent=1 // loop_body
      %s29 = ssub.s32 %s24, 1
      %s30 = ssub.s32 %s24, 2
      %s37 = sadd.s32 1, %s32
      %p38 = scmp.ge.s32.totalorder %s37, 1
      %s39 = scalar_select %p38, 0, %s37
      %s40 = sadd.s32 1, %s31
      %s41 = scalar_select %p38, %s40, %s31
      %p42 = scmp.ge.s32.totalorder %s41, 2
      %s43 = scalar_select %p42, 0, %s41
      %s44 = ssub.s32 %s31, %s43
      %s45 = ssub.s32 %s32, %s39
      %s46 = sor.u32 %s44, %s45
      %p47 = scmp.eq.s32.totalorder %s46, 0
      %s49 = sadd.s32 %s48, 1
      %s50 = scalar_select %p47, %s48, %s49
      %p53 = pneg %p47
      %p54 = scmp.eq.s32.totalorder %s24, 1
      %p55 = por %p53, %p54
      %p56 = scmp.ne.s32.totalorder %s48, %s51
      %p57 = scmp.eq.s32.totalorder %s24, 0
      %p58 = por %p56, %p57
      %p59 = scmp.ne.s32.totalorder %s48, %s51
      %p60 = scmp.eq.s32.totalorder %s29, 1
      %p61 = por %p59, %p60
      %p62 = scmp.ne.s32.totalorder %s51, %s52
      %p63 = scmp.eq.s32.totalorder %s29, 0
      %p64 = por %p62, %p63
      %p65 = scmp.ne.s32.totalorder %s51, %s52
      %p66 = scmp.eq.s32.totalorder %s30, 1
      %p67 = por %p65, %p66
      %p69 = scmp.ne.s32.totalorder %s52, %s68
      %p70 = scmp.eq.s32.totalorder %s30, 0
      %p71 = por %p69, %p70
      %s72 = ssub.s32 %s31, %s43
      %p73 = scmp.eq.s32.totalorder %s72, 0
      %s75 = sadd.s32 %s74, 1
      %s76 = scalar_select %p73, %s74, %s75
      %p79 = pneg %p73
      %p80 = scmp.eq.s32.totalorder %s24, 1
      %p81 = por %p79, %p80
      %p82 = scmp.ne.s32.totalorder %s74, %s77
      %p83 = scmp.eq.s32.totalorder %s24, 0
      %p84 = por %p82, %p83
      %p85 = scmp.ne.s32.totalorder %s74, %s77
      %p86 = scmp.eq.s32.totalorder %s29, 1
      %p87 = por %p85, %p86
      %p88 = scmp.ne.s32.totalorder %s77, %s78
      %p89 = scmp.eq.s32.totalorder %s29, 0
      %p90 = por %p88, %p89
      %p91 = scmp.ne.s32.totalorder %s77, %s78
      %p92 = scmp.eq.s32.totalorder %s30, 1
      %p93 = por %p91, %p92
      %p95 = scmp.ne.s32.totalorder %s78, %s94
      %p96 = scmp.eq.s32.totalorder %s30, 0
      %p97 = por %p95, %p96
      %s99 = sadd.s32 %s98, 1
      %p102 = scmp.eq.s32.totalorder %s24, 1
      %p103 = scmp.ne.s32.totalorder %s98, %s100
      %p104 = scmp.eq.s32.totalorder %s24, 0
      %p105 = por %p103, %p104
      %p106 = scmp.ne.s32.totalorder %s98, %s100
      %p107 = scmp.eq.s32.totalorder %s29, 1
      %p108 = por %p106, %p107
      %p109 = scmp.ne.s32.totalorder %s100, %s101
      %p110 = scmp.eq.s32.totalorder %s29, 0
      %p111 = por %p109, %p110
      %p112 = scmp.ne.s32.totalorder %s100, %s101
      %p113 = scmp.eq.s32.totalorder %s30, 1
      %p114 = por %p112, %p113
      %p116 = scmp.ne.s32.totalorder %s101, %s115
      %p117 = scmp.eq.s32.totalorder %s30, 0
      %p118 = por %p116, %p117
      %s120 = sadd.s32 %s119, 1
      %p123 = scmp.eq.s32.totalorder %s24, 1
      %p124 = scmp.ne.s32.totalorder %s119, %s121
      %p125 = scmp.eq.s32.totalorder %s24, 0
      %p126 = por %p124, %p125
      %p127 = scmp.ne.s32.totalorder %s119, %s121
      %p128 = scmp.eq.s32.totalorder %s29, 1
      %p129 = por %p127, %p128
      %p130 = scmp.ne.s32.totalorder %s121, %s122
      %p131 = scmp.eq.s32.totalorder %s29, 0
      %p132 = por %p130, %p131
      %p133 = scmp.ne.s32.totalorder %s121, %s122
      %p134 = scmp.eq.s32.totalorder %s30, 1
      %p135 = por %p133, %p134
      %p137 = scmp.ne.s32.totalorder %s122, %s136
      %p138 = scmp.eq.s32.totalorder %s30, 0
      %p139 = por %p137, %p138
      %s141 = sadd.s32 %s140, 1
      %p144 = scmp.eq.s32.totalorder %s24, 1
      %p145 = scmp.ne.s32.totalorder %s140, %s142
      %p146 = scmp.eq.s32.totalorder %s24, 0
      %p147 = por %p145, %p146
      %p148 = scmp.ne.s32.totalorder %s140, %s142
      %p149 = scmp.eq.s32.totalorder %s29, 1
      %p150 = por %p148, %p149
      %p151 = scmp.ne.s32.totalorder %s142, %s143
      %p152 = scmp.eq.s32.totalorder %s29, 0
      %p153 = por %p151, %p152
      %p154 = scmp.ne.s32.totalorder %s142, %s143
      %p155 = scmp.eq.s32.totalorder %s30, 1
      %p156 = por %p154, %p155
      %p158 = scmp.ne.s32.totalorder %s143, %s157
      %p159 = scmp.eq.s32.totalorder %s30, 0
      %p160 = por %p158, %p159
      %s162 = sadd.s32 %s161, 1
      %p165 = scmp.eq.s32.totalorder %s24, 1
      %p166 = scmp.ne.s32.totalorder %s161, %s163
      %p167 = scmp.eq.s32.totalorder %s24, 0
      %p168 = por %p166, %p167
      %p169 = scmp.ne.s32.totalorder %s161, %s163
      %p170 = scmp.eq.s32.totalorder %s29, 1
      %p171 = por %p169, %p170
      %p172 = scmp.ne.s32.totalorder %s163, %s164
      %p173 = scmp.eq.s32.totalorder %s29, 0
      %p174 = por %p172, %p173
      %p175 = scmp.ne.s32.totalorder %s163, %s164
      %p176 = scmp.eq.s32.totalorder %s30, 1
      %p177 = por %p175, %p176
      %p179 = scmp.ne.s32.totalorder %s164, %s178
      %p180 = scmp.eq.s32.totalorder %s30, 0
      %p181 = por %p179, %p180
      %s183 = sadd.s32 %s182, 1
      %p186 = scmp.eq.s32.totalorder %s24, 1
      %p187 = scmp.ne.s32.totalorder %s182, %s184
      %p188 = scmp.eq.s32.totalorder %s24, 0
      %p189 = por %p187, %p188
      %p190 = scmp.ne.s32.totalorder %s182, %s184
      %p191 = scmp.eq.s32.totalorder %s29, 1
      %p192 = por %p190, %p191
      %p193 = scmp.ne.s32.totalorder %s184, %s185
      %p194 = scmp.eq.s32.totalorder %s29, 0
      %p195 = por %p193, %p194
      %p196 = scmp.ne.s32.totalorder %s184, %s185
      %p197 = scmp.eq.s32.totalorder %s30, 1
      %p198 = por %p196, %p197
      %p200 = scmp.ne.s32.totalorder %s185, %s199
      %p201 = scmp.eq.s32.totalorder %s30, 0
      %p202 = por %p200, %p201
      %s204 = sadd.s32 %s203, 1
      %p207 = scmp.eq.s32.totalorder %s24, 1
      %p208 = scmp.ne.s32.totalorder %s203, %s205
      %p209 = scmp.eq.s32.totalorder %s24, 0
      %p210 = por %p208, %p209
      %p211 = scmp.ne.s32.totalorder %s203, %s205
      %p212 = scmp.eq.s32.totalorder %s29, 1
      %p213 = por %p211, %p212
      %p214 = scmp.ne.s32.totalorder %s205, %s206
      %p215 = scmp.eq.s32.totalorder %s29, 0
      %p216 = por %p214, %p215
      %p217 = scmp.ne.s32.totalorder %s205, %s206
      %p218 = scmp.eq.s32.totalorder %s30, 1
      %p219 = por %p217, %p218
      %p221 = scmp.ne.s32.totalorder %s206, %s220
      %p222 = scmp.eq.s32.totalorder %s30, 0
      %p223 = por %p221, %p222
      %s224 = ssub.s32 %s31, %s43
      %s225 = ssub.s32 %s32, %s39
      %s226 = sor.u32 %s224, %s225
      %p227 = scmp.eq.s32.totalorder %s226, 0
      %s229 = sadd.s32 %s228, 1
      %s230 = scalar_select %p227, %s228, %s229
      %p233 = pneg %p227
      %p234 = scmp.eq.s32.totalorder %s24, 1
      %p235 = por %p233, %p234
      %p236 = scmp.ne.s32.totalorder %s228, %s231
      %p237 = scmp.eq.s32.totalorder %s24, 0
      %p238 = por %p236, %p237
      %p239 = scmp.ne.s32.totalorder %s228, %s231
      %p240 = scmp.eq.s32.totalorder %s29, 1
      %p241 = por %p239, %p240
      %p242 = scmp.ne.s32.totalorder %s231, %s232
      %p243 = scmp.eq.s32.totalorder %s29, 0
      %p244 = por %p242, %p243
      %p245 = scmp.ne.s32.totalorder %s231, %s232
      %p246 = scmp.eq.s32.totalorder %s30, 1
      %p247 = por %p245, %p246
      %p249 = scmp.ne.s32.totalorder %s232, %s248
      %p250 = scmp.eq.s32.totalorder %s30, 0
      %p251 = por %p249, %p250
      %p252 = scmp.le.s32.totalorder 1, %s24
      %p253 = scmp.lt.s32.totalorder %s24, 3
      %p254 = pnand %p252, %p253
      %p255 = pneg %p254
      // Predicated region
      $region9: #{tpu_custom_call.1} parent=5 // pred_check
        _
      $region10: #{tpu_custom_call.1} parent=5 // pred_check_branch
        %257 = sbr.rel (%p254) target = $region12
      $region11: #{tpu_custom_call.1} parent=5 // pred_region
        %s258 = ssub.s32 %s24, 1
        // Predicated region
        $region13: #{tpu_custom_call.1} parent=11 // pred_check
          %p259 = pneg %p111
        $region14: #{tpu_custom_call.1} parent=11 // pred_check_branch
          %261 = sbr.rel (%p259) target = $region16
        $region15: #{tpu_custom_call.1} parent=11 // pred_region
          %s263 = ssub.s32 256, 256
          %264 = vsyncadd [#allocation9], %s263
          %s265 = sshll.u32 [#allocation10], 4
          %s266 = int_to_ptr.vmem [resolvable:$true] %s265
          %271 = dma.hbm_to_vmem [thread:$0]  %s2, 256, %s266, [#allocation9], 64, 64, 4
        $region16: #{tpu_custom_call.1} parent=11 // pred_fallthru
          _
        // Predicated region
        $region17: #{tpu_custom_call.1} parent=11 // pred_check
          %p272 = pneg %p132
        $region18: #{tpu_custom_call.1} parent=11 // pred_check_branch
          %274 = sbr.rel (%p272) target = $region20
        $region19: #{tpu_custom_call.1} parent=11 // pred_region
          _
        $region20: #{tpu_custom_call.1} parent=11 // pred_fallthru
          _
        // Predicated region
        $region21: #{tpu_custom_call.1} parent=11 // pred_check
          %p275 = pneg %p153
        $region22: #{tpu_custom_call.1} parent=11 // pred_check_branch
          %277 = sbr.rel (%p275) target = $region24
        $region23: #{tpu_custom_call.1} parent=11 // pred_region
          %s279 = ssub.s32 256, 256
          %280 = vsyncadd [#allocation12], %s279
          %s281 = sshll.u32 [#allocation11], 4
          %s282 = int_to_ptr.vmem [resolvable:$true] %s281
          %287 = dma.hbm_to_vmem [thread:$0]  %s4, 256, %s282, [#allocation12], 64, 64, 4
        $region24: #{tpu_custom_call.1} parent=11 // pred_fallthru
          _
        // Predicated region
        $region25: #{tpu_custom_call.1} parent=11 // pred_check
          %p288 = pneg %p174
        $region26: #{tpu_custom_call.1} parent=11 // pred_check_branch
          %290 = sbr.rel (%p288) target = $region28
        $region27: #{tpu_custom_call.1} parent=11 // pred_region
          _
        $region28: #{tpu_custom_call.1} parent=11 // pred_fallthru
          _
        // Predicated region
        $region29: #{tpu_custom_call.1} parent=11 // pred_check
          %p291 = pneg %p195
        $region30: #{tpu_custom_call.1} parent=11 // pred_check_branch
          %293 = sbr.rel (%p291) target = $region32
        $region31: #{tpu_custom_call.1} parent=11 // pred_region
          %s295 = ssub.s32 256, 256
          %296 = vsyncadd [#allocation12], %s295
          %s297 = sshll.u32 [#allocation13], 4
          %s298 = int_to_ptr.vmem [resolvable:$true] %s297
          %303 = dma.hbm_to_vmem [thread:$0]  %s6, 256, %s298, [#allocation12], 64, 64, 4
        $region32: #{tpu_custom_call.1} parent=11 // pred_fallthru
          _
        // Predicated region
        $region33: #{tpu_custom_call.1} parent=11 // pred_check
          %p304 = pneg %p216
        $region34: #{tpu_custom_call.1} parent=11 // pred_check_branch
          %306 = sbr.rel (%p304) target = $region36
        $region35: #{tpu_custom_call.1} parent=11 // pred_region
          _
        $region36: #{tpu_custom_call.1} parent=11 // pred_fallthru
          _
      $region12: #{tpu_custom_call.1} parent=5 // pred_fallthru
        _
      %p307 = scmp.lt.s32.totalorder %s24, 2
      // Predicated region
      $region37: #{tpu_custom_call.1} parent=5 // pred_check
        %p308 = pneg %p307
      $region38: #{tpu_custom_call.1} parent=5 // pred_check_branch
        %310 = sbr.rel (%p308) target = $region40
      $region39: #{tpu_custom_call.1} parent=5 // pred_region
        // Predicated region
        $region41: #{tpu_custom_call.1} parent=39 // pred_check
          %p311 = pneg %p58
        $region42: #{tpu_custom_call.1} parent=39 // pred_check_branch
          %313 = sbr.rel (%p311) target = $region44
        $region43: #{tpu_custom_call.1} parent=39 // pred_region
          %s314 = sand.u32 %s48, 1
          %s315 = scalar_lea.sflag [#allocation6], %s314
          %s316 = sand.u32 %s48, 1
          %s317 = smul.addr %s316, 4
          %s318 = scalar_lea.vmem [#allocation5], %s317
          %s320 = ssub.s32 64, 64
          %321 = vsyncadd %s315, %s320
          %s322 = sadd.s32 %s32, %s31
          %s323 = smul.addr %s322, 64
          %s324 = scalar_lea.hbm %s0, %s323
          %s326 = sshll.u32 %s318, 4
          %s327 = int_to_ptr.vmem [resolvable:$true] %s326
          %329 = dma.hbm_to_vmem [thread:$0]  %s324, 64, %s327, %s315
        $region44: #{tpu_custom_call.1} parent=39 // pred_fallthru
          _
        // Predicated region
        $region45: #{tpu_custom_call.1} parent=39 // pred_check
          %p330 = pneg %p84
        $region46: #{tpu_custom_call.1} parent=39 // pred_check_branch
          %332 = sbr.rel (%p330) target = $region48
        $region47: #{tpu_custom_call.1} parent=39 // pred_region
          %s333 = sand.u32 %s24, 1
          %s334 = scalar_lea.sflag [#allocation9], %s333
          %s335 = sand.u32 %s74, 1
          %s336 = smul.addr %s335, 4
          %s337 = scalar_lea.vmem [#allocation8], %s336
          %s339 = ssub.s32 64, 64
          %340 = vsyncadd %s334, %s339
          %s341 = smul.addr %s31, 64
          %s342 = scalar_lea.hbm %s1, %s341
          %s344 = sshll.u32 %s337, 4
          %s345 = int_to_ptr.vmem [resolvable:$true] %s344
          %347 = dma.hbm_to_vmem [thread:$0]  %s342, 64, %s345, %s334
        $region48: #{tpu_custom_call.1} parent=39 // pred_fallthru
          _
      $region40: #{tpu_custom_call.1} parent=5 // pred_fallthru
        _
      %p348 = scmp.le.s32.totalorder 1, %s24
      %p349 = scmp.lt.s32.totalorder %s24, 3
      %p350 = pnand %p348, %p349
      %p351 = pneg %p350
      // Predicated region
      $region49: #{tpu_custom_call.1} parent=5 // pred_check
        _
      $region50: #{tpu_custom_call.1} parent=5 // pred_check_branch
        %353 = sbr.rel (%p350) target = $region52
      $region51: #{tpu_custom_call.1} parent=5 // pred_region
        %s354 = ssub.s32 %s24, 1
        %s355 = sand.u32 %s51, 1
        %s356 = scalar_lea.sflag [#allocation6], %s355
        %s357 = sand.u32 %s51, 1
        %s358 = smul.addr %s357, 4
        %s359 = scalar_lea.vmem [#allocation5], %s358
        // Predicated region
        $region53: #{tpu_custom_call.1} parent=51 // pred_check
          %p360 = pneg %p64
        $region54: #{tpu_custom_call.1} parent=51 // pred_check_branch
          %362 = sbr.rel (%p360) target = $region56
        $region55: #{tpu_custom_call.1} parent=51 // pred_region
          %363 = dma.done %s356, 64
        $region56: #{tpu_custom_call.1} parent=51 // pred_fallthru
          _
        %s364 = sand.u32 %s29, 1
        %s365 = scalar_lea.sflag [#allocation9], %s364
        %s366 = sand.u32 %s77, 1
        %s367 = smul.addr %s366, 4
        %s368 = scalar_lea.vmem [#allocation8], %s367
        // Predicated region
        $region57: #{tpu_custom_call.1} parent=51 // pred_check
          %p369 = pneg %p90
        $region58: #{tpu_custom_call.1} parent=51 // pred_check_branch
          %371 = sbr.rel (%p369) target = $region60
        $region59: #{tpu_custom_call.1} parent=51 // pred_region
          %372 = dma.done %s365, 64
        $region60: #{tpu_custom_call.1} parent=51 // pred_fallthru
          _
        // Predicated region
        $region61: #{tpu_custom_call.1} parent=51 // pred_check
          %p373 = pneg %p111
        $region62: #{tpu_custom_call.1} parent=51 // pred_check_branch
          %375 = sbr.rel (%p373) target = $region64
        $region63: #{tpu_custom_call.1} parent=51 // pred_region
          %376 = dma.done [#allocation9], 256
        $region64: #{tpu_custom_call.1} parent=51 // pred_fallthru
          _
        // Predicated region
        $region65: #{tpu_custom_call.1} parent=51 // pred_check
          %p377 = pneg %p153
        $region66: #{tpu_custom_call.1} parent=51 // pred_check_branch
          %379 = sbr.rel (%p377) target = $region68
        $region67: #{tpu_custom_call.1} parent=51 // pred_region
          %380 = dma.done [#allocation12], 256
        $region68: #{tpu_custom_call.1} parent=51 // pred_fallthru
          _
        // Predicated region
        $region69: #{tpu_custom_call.1} parent=51 // pred_check
          %p381 = pneg %p195
        $region70: #{tpu_custom_call.1} parent=51 // pred_check_branch
          %383 = sbr.rel (%p381) target = $region72
        $region71: #{tpu_custom_call.1} parent=51 // pred_region
          %384 = dma.done [#allocation12], 256
        $region72: #{tpu_custom_call.1} parent=51 // pred_fallthru
          _
        %s385 = sand.u32 %s51, 1
        %s386 = scalar_lea.sflag [#allocation6], %s385
        %s387 = sand.u32 %s51, 1
        %s388 = smul.addr %s387, 4
        %s389 = scalar_lea.vmem [#allocation5], %s388
        %p390 = pneg %p64
        %p391 = pneg %p61
        %s392 = sand.u32 %s29, 1
        %s393 = scalar_lea.sflag [#allocation9], %s392
        %s394 = sand.u32 %s77, 1
        %s395 = smul.addr %s394, 4
        %s396 = scalar_lea.vmem [#allocation8], %s395
        %p397 = pneg %p90
        %p398 = pneg %p87
        %p399 = pneg %p111
        %p400 = pneg %p108
        %p401 = pneg %p132
        %p402 = pneg %p129
        %p403 = pneg %p153
        %p404 = pneg %p150
        %p405 = pneg %p174
        %p406 = pneg %p171
        %p407 = pneg %p195
        %p408 = pneg %p192
        %p409 = pneg %p216
        %p410 = pneg %p213
        %p411 = pneg %p244
        %p412 = pneg %p241
        %s413 = sand.u32 %s231, 1
        %s414 = scalar_lea.sflag [#allocation7], %s413
        %s415 = sand.u32 %s231, 1
        %s416 = smul.addr %s415, 4
        %s417 = scalar_lea.vmem [#allocation14], %s416
        %p419 = scmp.eq.s32.totalorder %s34, 0
        // Predicated region
        $region73: #{tpu_custom_call.1} parent=51 // pred_check
          %p420 = pneg %p419
        $region74: #{tpu_custom_call.1} parent=51 // pred_check_branch
          %422 = sbr.rel (%p420) target = $region76
        $region75: #{tpu_custom_call.1} parent=51 // pred_region
          %v423 = vld [vmem:[%s368] sm:$0xf]
          %v424 = vld [vmem:[#allocation11] sm:$0xf]
          %v425 = vld [vmem:[#allocation11 + $0x4] sm:$0xf]
          %v426 = vld [vmem:[#allocation11 + $0x8] sm:$0xf]
          %v427 = vld [vmem:[#allocation11 + $0xc] sm:$0xf]
          %v428 = vld [vmem:[%s5] sm:$0x1]
          %v430 = vlaneseq
          %v431 = vshrl.u32 %v430, 7
          %v432 = vsub.s32 0, %v431
          %v433 = vrot.slane %v428, %v432
          %v439 = vunpack.c.l.b16 %v424
          %v440 = vunpack.c.l.b16 %v425
          %v441 = vunpack.c.l.b16 %v426
          %v442 = vunpack.c.l.b16 %v427
          %v443 = vpack.c.b16 %v440, %v439
          %v444 = vpack.c.b16 %v442, %v441
          %vm447 = vcmask 261120
          %v449 = vsel %vm447, %v423, 0
          %451 = vmatprep.subr.bf16.mxu0 0
          %452 = vmatpush1.bf16.msra.mxu0 0
          %453 = vmatprep.subr.bf16.mxu0 0
          %454 = vmatpush1.bf16.msra.mxu0 0
          %455 = vmatprep.subr.bf16.mxu0 0
          %456 = vmatpush1.bf16.msra.mxu0 0
          %457 = vmatprep.subr.bf16.mxu0 0
          %458 = vmatpush1.bf16.msra.mxu0 0
          %459 = vmatprep.subr.bf16.mxu0 0
          %460 = vmatpush1.bf16.msra.mxu0 0
          %461 = vmatprep.subr.bf16.mxu0 0
          %462 = vmatpush1.bf16.msra.mxu0 0
          %463 = vmatprep.subr.bf16.mxu0 0
          %464 = vmatpush1.bf16.msra.mxu0 %v444
          %465 = vmatprep.subr.bf16.mxu0 0
          %466 = vmatpush1.bf16.msra.mxu0 %v443
          %467 = vmatprep.subr.bf16.mxu0 0
          %468 = vmatpush2.bf16.msra.mxu0 0
          %469 = vmatprep.subr.bf16.mxu0 0
          %470 = vmatpush2.bf16.msra.mxu0 0
          %471 = vmatprep.subr.bf16.mxu0 0
          %472 = vmatpush2.bf16.msra.mxu0 0
          %473 = vmatprep.subr.bf16.mxu0 0
          %474 = vmatpush2.bf16.msra.mxu0 0
          %475 = vmatprep.subr.bf16.mxu0 0
          %476 = vmatpush2.bf16.msra.mxu0 0
          %477 = vmatprep.subr.bf16.mxu0 0
          %478 = vmatpush2.bf16.msra.mxu0 0
          %479 = vmatprep.subr.bf16.mxu0 0
          %480 = vmatpush2.bf16.msra.mxu0 0
          %481 = vmatprep.subr.bf16.mxu0 0
          %482 = vmatpush2.bf16.msra.mxu0 0
          %483 = vmatprep.mubr.bf16.mxu0 0
          %484 = vmatmul.mubr.bf16.gmra.mxu0 %v449
          %v485 = vpop.f32.mrf.mxu0
          %v486 = vadd.f32 %v433, %v485
          %v487 = vpop.f32.mrf.mxu0
          %v488 = vpop.f32.mrf.mxu0
          %v489 = vpop.f32.mrf.mxu0
          %490 = vdwg.mxu0
          %v491 = vpack.c.bf16 %v486, %v486
          %vm492 = vcmask 257024
          %493 = vst.msk [vmem:[#allocation2] sm:$0xf] %vm492, %v491
          %v495 = vunpack.c.l.b16 %v491
          %v496 = vpack.c.b16 %v495, %v495
          %497 = vrot.lane.b32.xlu0 %v496, 96
          %v498 = vpop.permute.xlu0 %497
          %500 = vst.msk [vmem:[#allocation3] sm:$0xf] %vm492, %v498
        $region76: #{tpu_custom_call.1} parent=51 // pred_fallthru
          _
        %v501 = vld [vmem:[%s359] sm:$0xf]
        %v502 = vld [vmem:[#allocation10] sm:$0xf]
        %v503 = vld [vmem:[#allocation10 + $0x4] sm:$0xf]
        %v504 = vld [vmem:[#allocation10 + $0x8] sm:$0xf]
        %v505 = vld [vmem:[#allocation10 + $0xc] sm:$0xf]
        %v506 = vld [vmem:[%s3] sm:$0x1]
        %v508 = vlaneseq
        %v509 = vshrl.u32 %v508, 7
        %v510 = vsub.s32 0, %v509
        %v511 = vrot.slane %v506, %v510
        %v517 = vunpack.c.l.b16 %v502
        %v518 = vunpack.c.l.b16 %v503
        %v519 = vunpack.c.l.b16 %v504
        %v520 = vunpack.c.l.b16 %v505
        %v521 = vpack.c.b16 %v518, %v517
        %v522 = vpack.c.b16 %v520, %v519
        %vm525 = vcmask 261120
        %v527 = vsel %vm525, %v501, 0
        %529 = vmatprep.subr.bf16.mxu0 0
        %530 = vmatpush1.bf16.msra.mxu0 0
        %531 = vmatprep.subr.bf16.mxu0 0
        %532 = vmatpush1.bf16.msra.mxu0 0
        %533 = vmatprep.subr.bf16.mxu0 0
        %534 = vmatpush1.bf16.msra.mxu0 0
        %535 = vmatprep.subr.bf16.mxu0 0
        %536 = vmatpush1.bf16.msra.mxu0 0
        %537 = vmatprep.subr.bf16.mxu0 0
        %538 = vmatpush1.bf16.msra.mxu0 0
        %539 = vmatprep.subr.bf16.mxu0 0
        %540 = vmatpush1.bf16.msra.mxu0 0
        %541 = vmatprep.subr.bf16.mxu0 0
        %542 = vmatpush1.bf16.msra.mxu0 %v522
        %543 = vmatprep.subr.bf16.mxu0 0
        %544 = vmatpush1.bf16.msra.mxu0 %v521
        %545 = vmatprep.subr.bf16.mxu0 0
        %546 = vmatpush2.bf16.msra.mxu0 0
        %547 = vmatprep.subr.bf16.mxu0 0
        %548 = vmatpush2.bf16.msra.mxu0 0
        %549 = vmatprep.subr.bf16.mxu0 0
        %550 = vmatpush2.bf16.msra.mxu0 0
        %551 = vmatprep.subr.bf16.mxu0 0
        %552 = vmatpush2.bf16.msra.mxu0 0
        %553 = vmatprep.subr.bf16.mxu0 0
        %554 = vmatpush2.bf16.msra.mxu0 0
        %555 = vmatprep.subr.bf16.mxu0 0
        %556 = vmatpush2.bf16.msra.mxu0 0
        %557 = vmatprep.subr.bf16.mxu0 0
        %558 = vmatpush2.bf16.msra.mxu0 0
        %559 = vmatprep.subr.bf16.mxu0 0
        %560 = vmatpush2.bf16.msra.mxu0 0
        %561 = vmatprep.mubr.bf16.mxu0 0
        %562 = vmatmul.mubr.bf16.gmra.mxu0 %v527
        %v563 = vpop.f32.mrf.mxu0
        %v564 = vadd.f32 %v511, %v563
        %v565 = vpop.f32.mrf.mxu0
        %v566 = vpop.f32.mrf.mxu0
        %v567 = vpop.f32.mrf.mxu0
        %568 = vdwg.mxu0
        %v569 = vpack.c.bf16 %v564, %v564
        %v570 = vld [vmem:[#allocation2] sm:$0xf]
        %v571 = vld [vmem:[#allocation3] sm:$0xf]
        %vm572 = vcmask 64512
        %v574 = vsel %vm572, %v569, 0
        %v577 = vsel %vm572, %v570, 0
        %579 = vmatprep.subr.bf16.mxu0 0
        %580 = vmatpush1.bf16.xpose.msra.mxu0 0
        %581 = vmatprep.subr.bf16.mxu0 0
        %582 = vmatpush1.bf16.xpose.msra.mxu0 0
        %583 = vmatprep.subr.bf16.mxu0 0
        %584 = vmatpush1.bf16.xpose.msra.mxu0 0
        %585 = vmatprep.subr.bf16.mxu0 0
        %586 = vmatpush1.bf16.xpose.msra.mxu0 0
        %587 = vmatprep.subr.bf16.mxu0 0
        %588 = vmatpush1.bf16.xpose.msra.mxu0 0
        %589 = vmatprep.subr.bf16.mxu0 0
        %590 = vmatpush1.bf16.xpose.msra.mxu0 0
        %591 = vmatprep.subr.bf16.mxu0 0
        %592 = vmatpush1.bf16.xpose.msra.mxu0 0
        %593 = vmatprep.subr.bf16.mxu0 0
        %594 = vmatpush1.bf16.xpose.msra.mxu0 %v577
        %595 = vmatprep.subr.bf16.mxu0 0
        %596 = vmatpush2.bf16.xpose.msra.mxu0 0
        %597 = vmatprep.subr.bf16.mxu0 0
        %598 = vmatpush2.bf16.xpose.msra.mxu0 0
        %599 = vmatprep.subr.bf16.mxu0 0
        %600 = vmatpush2.bf16.xpose.msra.mxu0 0
        %601 = vmatprep.subr.bf16.mxu0 0
        %602 = vmatpush2.bf16.xpose.msra.mxu0 0
        %603 = vmatprep.subr.bf16.mxu0 0
        %604 = vmatpush2.bf16.xpose.msra.mxu0 0
        %605 = vmatprep.subr.bf16.mxu0 0
        %606 = vmatpush2.bf16.xpose.msra.mxu0 0
        %607 = vmatprep.subr.bf16.mxu0 0
        %608 = vmatpush2.bf16.xpose.msra.mxu0 0
        %609 = vmatprep.subr.bf16.mxu0 0
        %610 = vmatpush2.bf16.xpose.msra.mxu0 0
        %611 = vmatprep.mubr.bf16.mxu0 0
        %612 = vmatmul.mubr.bf16.gmra.mxu0 %v574
        %v613 = vpop.f32.mrf.mxu0
        %v614 = vadd.f32 0.0, %v613
        %v615 = vpop.f32.mrf.mxu0
        %v616 = vpop.f32.mrf.mxu0
        %v617 = vpop.f32.mrf.mxu0
        %618 = vdwg.mxu0
        %v619 = vsel %vm572, %v614, -inf
        %620 = vmax.xlane.f32.xlu0 %v619
        %v621 = vpop.xlane.xlu0 %620
        %v622 = vsub.f32 %v614, %v621
        %v623 = vpack.c.bf16 %v622, %v622
        %v625 = vmul.bf16 %v623, 1069105081
        %v626 = vpow.bf16.pop %v625
        %v627 = vunpack.c.l.bf16 %v626
        %v628 = vsel %vm572, %v627, 0.0
        %629 = vadd.xlane.f32.xlu0 %v628
        %v630 = vpop.xlane.xlu0 %629
        %v632 = vsel %vm572, %v626, 0
        %vm634 = vcmask 1043456
        %v636 = vsel %vm634, %v571, 0
        %638 = vmatprep.subr.bf16.mxu0 0
        %639 = vmatpush1.bf16.msra.mxu0 0
        %640 = vmatprep.subr.bf16.mxu0 0
        %641 = vmatpush1.bf16.msra.mxu0 0
        %642 = vmatprep.subr.bf16.mxu0 0
        %643 = vmatpush1.bf16.msra.mxu0 0
        %644 = vmatprep.subr.bf16.mxu0 0
        %645 = vmatpush1.bf16.msra.mxu0 0
        %646 = vmatprep.subr.bf16.mxu0 0
        %647 = vmatpush1.bf16.msra.mxu0 0
        %648 = vmatprep.subr.bf16.mxu0 0
        %649 = vmatpush1.bf16.msra.mxu0 0
        %650 = vmatprep.subr.bf16.mxu0 0
        %651 = vmatpush1.bf16.msra.mxu0 0
        %652 = vmatprep.subr.bf16.mxu0 0
        %653 = vmatpush1.bf16.msra.mxu0 %v636
        %654 = vmatprep.subr.bf16.mxu0 0
        %655 = vmatpush2.bf16.msra.mxu0 0
        %656 = vmatprep.subr.bf16.mxu0 0
        %657 = vmatpush2.bf16.msra.mxu0 0
        %658 = vmatprep.subr.bf16.mxu0 0
        %659 = vmatpush2.bf16.msra.mxu0 0
        %660 = vmatprep.subr.bf16.mxu0 0
        %661 = vmatpush2.bf16.msra.mxu0 0
        %662 = vmatprep.subr.bf16.mxu0 0
        %663 = vmatpush2.bf16.msra.mxu0 0
        %664 = vmatprep.subr.bf16.mxu0 0
        %665 = vmatpush2.bf16.msra.mxu0 0
        %666 = vmatprep.subr.bf16.mxu0 0
        %667 = vmatpush2.bf16.msra.mxu0 0
        %668 = vmatprep.subr.bf16.mxu0 0
        %669 = vmatpush2.bf16.msra.mxu0 0
        %670 = vmatprep.mubr.bf16.mxu0 0
        %671 = vmatmul.mubr.bf16.gmra.mxu0 %v632
        %v672 = vpop.f32.mrf.mxu0
        %v673 = vadd.f32 0.0, %v672
        %v674 = vpop.f32.mrf.mxu0
        %v675 = vpop.f32.mrf.mxu0
        %v676 = vpop.f32.mrf.mxu0
        %677 = vdwg.mxu0
        %v678 = vrcp.pop %v630
        %v679 = vmul.f32 %v673, %v678
        %v680 = vpack.c.bf16 %v679, %v679
        %vm681 = vcmask 60416
        %682 = vst.msk [vmem:[#allocation4] sm:$0xf] %vm681, %v680
        %v683 = vld [vmem:[#allocation2] sm:$0xf]
        %v684 = vld [vmem:[#allocation3] sm:$0xf]
        %686 = vrot.lane.b32.xlu0 %v569, 120
        %v687 = vpop.permute.xlu0 %686
        %v689 = vunpack.c.l.b16 %v683
        %v690 = vpack.c.b16 %v689, %v689
        %691 = vrot.lane.b32.xlu0 %v690, 120
        %v692 = vpop.permute.xlu0 %691
        %v694 = vsel %vm572, %v687, 0
        %v697 = vsel %vm572, %v692, 0
        %699 = vmatprep.subr.bf16.mxu0 0
        %700 = vmatpush1.bf16.xpose.msra.mxu0 0
        %701 = vmatprep.subr.bf16.mxu0 0
        %702 = vmatpush1.bf16.xpose.msra.mxu0 0
        %703 = vmatprep.subr.bf16.mxu0 0
        %704 = vmatpush1.bf16.xpose.msra.mxu0 0
        %705 = vmatprep.subr.bf16.mxu0 0
        %706 = vmatpush1.bf16.xpose.msra.mxu0 0
        %707 = vmatprep.subr.bf16.mxu0 0
        %708 = vmatpush1.bf16.xpose.msra.mxu0 0
        %709 = vmatprep.subr.bf16.mxu0 0
        %710 = vmatpush1.bf16.xpose.msra.mxu0 0
        %711 = vmatprep.subr.bf16.mxu0 0
        %712 = vmatpush1.bf16.xpose.msra.mxu0 0
        %713 = vmatprep.subr.bf16.mxu0 0
        %714 = vmatpush1.bf16.xpose.msra.mxu0 %v697
        %715 = vmatprep.subr.bf16.mxu0 0
        %716 = vmatpush2.bf16.xpose.msra.mxu0 0
        %717 = vmatprep.subr.bf16.mxu0 0
        %718 = vmatpush2.bf16.xpose.msra.mxu0 0
        %719 = vmatprep.subr.bf16.mxu0 0
        %720 = vmatpush2.bf16.xpose.msra.mxu0 0
        %721 = vmatprep.subr.bf16.mxu0 0
        %722 = vmatpush2.bf16.xpose.msra.mxu0 0
        %723 = vmatprep.subr.bf16.mxu0 0
        %724 = vmatpush2.bf16.xpose.msra.mxu0 0
        %725 = vmatprep.subr.bf16.mxu0 0
        %726 = vmatpush2.bf16.xpose.msra.mxu0 0
        %727 = vmatprep.subr.bf16.mxu0 0
        %728 = vmatpush2.bf16.xpose.msra.mxu0 0
        %729 = vmatprep.subr.bf16.mxu0 0
        %730 = vmatpush2.bf16.xpose.msra.mxu0 0
        %731 = vmatprep.mubr.bf16.mxu0 0
        %732 = vmatmul.mubr.bf16.gmra.mxu0 %v694
        %v733 = vpop.f32.mrf.mxu0
        %v734 = vadd.f32 0.0, %v733
        %v735 = vpop.f32.mrf.mxu0
        %v736 = vpop.f32.mrf.mxu0
        %v737 = vpop.f32.mrf.mxu0
        %738 = vdwg.mxu0
        %v739 = vsel %vm572, %v734, -inf
        %740 = vmax.xlane.f32.xlu0 %v739
        %v741 = vpop.xlane.xlu0 %740
        %v742 = vsub.f32 %v734, %v741
        %v743 = vpack.c.bf16 %v742, %v742
        %v745 = vmul.bf16 %v743, 1069105081
        %v746 = vpow.bf16.pop %v745
        %v747 = vunpack.c.l.bf16 %v746
        %v748 = vsel %vm572, %v747, 0.0
        %749 = vadd.xlane.f32.xlu0 %v748
        %v750 = vpop.xlane.xlu0 %749
        %v752 = vunpack.c.l.b16 %v684
        %v753 = vpack.c.b16 %v752, %v752
        %754 = vrot.lane.b32.xlu0 %v753, 120
        %v755 = vpop.permute.xlu0 %754
        %v757 = vsel %vm572, %v746, 0
        %v760 = vsel %vm634, %v755, 0
        %762 = vmatprep.subr.bf16.mxu0 0
        %763 = vmatpush1.bf16.msra.mxu0 0
        %764 = vmatprep.subr.bf16.mxu0 0
        %765 = vmatpush1.bf16.msra.mxu0 0
        %766 = vmatprep.subr.bf16.mxu0 0
        %767 = vmatpush1.bf16.msra.mxu0 0
        %768 = vmatprep.subr.bf16.mxu0 0
        %769 = vmatpush1.bf16.msra.mxu0 0
        %770 = vmatprep.subr.bf16.mxu0 0
        %771 = vmatpush1.bf16.msra.mxu0 0
        %772 = vmatprep.subr.bf16.mxu0 0
        %773 = vmatpush1.bf16.msra.mxu0 0
        %774 = vmatprep.subr.bf16.mxu0 0
        %775 = vmatpush1.bf16.msra.mxu0 0
        %776 = vmatprep.subr.bf16.mxu0 0
        %777 = vmatpush1.bf16.msra.mxu0 %v760
        %778 = vmatprep.subr.bf16.mxu0 0
        %779 = vmatpush2.bf16.msra.mxu0 0
        %780 = vmatprep.subr.bf16.mxu0 0
        %781 = vmatpush2.bf16.msra.mxu0 0
        %782 = vmatprep.subr.bf16.mxu0 0
        %783 = vmatpush2.bf16.msra.mxu0 0
        %784 = vmatprep.subr.bf16.mxu0 0
        %785 = vmatpush2.bf16.msra.mxu0 0
        %786 = vmatprep.subr.bf16.mxu0 0
        %787 = vmatpush2.bf16.msra.mxu0 0
        %788 = vmatprep.subr.bf16.mxu0 0
        %789 = vmatpush2.bf16.msra.mxu0 0
        %790 = vmatprep.subr.bf16.mxu0 0
        %791 = vmatpush2.bf16.msra.mxu0 0
        %792 = vmatprep.subr.bf16.mxu0 0
        %793 = vmatpush2.bf16.msra.mxu0 0
        %794 = vmatprep.mubr.bf16.mxu0 0
        %795 = vmatmul.mubr.bf16.gmra.mxu0 %v757
        %v796 = vpop.f32.mrf.mxu0
        %v797 = vadd.f32 0.0, %v796
        %v798 = vpop.f32.mrf.mxu0
        %v799 = vpop.f32.mrf.mxu0
        %v800 = vpop.f32.mrf.mxu0
        %801 = vdwg.mxu0
        %v802 = vrcp.pop %v750
        %v803 = vmul.f32 %v797, %v802
        %v804 = vpack.c.bf16 %v803, %v803
        %v806 = vunpack.c.l.b16 %v804
        %v807 = vpack.c.b16 %v806, %v806
        %808 = vrot.lane.b32.xlu0 %v807, 8
        %v809 = vpop.permute.xlu0 %808
        %vm811 = vcmask 126016
        %812 = vst.msk [vmem:[#allocation4] sm:$0xf] %vm811, %v809
        %v813 = vld [vmem:[#allocation2] sm:$0xf]
        %v814 = vld [vmem:[#allocation3] sm:$0xf]
        %815 = vrot.lane.b32.xlu0 %v569, 112
        %v816 = vpop.permute.xlu0 %815
        %v818 = vunpack.c.l.b16 %v813
        %v819 = vpack.c.b16 %v818, %v818
        %820 = vrot.lane.b32.xlu0 %v819, 112
        %v821 = vpop.permute.xlu0 %820
        %v823 = vsel %vm572, %v816, 0
        %v826 = vsel %vm572, %v821, 0
        %828 = vmatprep.subr.bf16.mxu0 0
        %829 = vmatpush1.bf16.xpose.msra.mxu0 0
        %830 = vmatprep.subr.bf16.mxu0 0
        %831 = vmatpush1.bf16.xpose.msra.mxu0 0
        %832 = vmatprep.subr.bf16.mxu0 0
        %833 = vmatpush1.bf16.xpose.msra.mxu0 0
        %834 = vmatprep.subr.bf16.mxu0 0
        %835 = vmatpush1.bf16.xpose.msra.mxu0 0
        %836 = vmatprep.subr.bf16.mxu0 0
        %837 = vmatpush1.bf16.xpose.msra.mxu0 0
        %838 = vmatprep.subr.bf16.mxu0 0
        %839 = vmatpush1.bf16.xpose.msra.mxu0 0
        %840 = vmatprep.subr.bf16.mxu0 0
        %841 = vmatpush1.bf16.xpose.msra.mxu0 0
        %842 = vmatprep.subr.bf16.mxu0 0
        %843 = vmatpush1.bf16.xpose.msra.mxu0 %v826
        %844 = vmatprep.subr.bf16.mxu0 0
        %845 = vmatpush2.bf16.xpose.msra.mxu0 0
        %846 = vmatprep.subr.bf16.mxu0 0
        %847 = vmatpush2.bf16.xpose.msra.mxu0 0
        %848 = vmatprep.subr.bf16.mxu0 0
        %849 = vmatpush2.bf16.xpose.msra.mxu0 0
        %850 = vmatprep.subr.bf16.mxu0 0
        %851 = vmatpush2.bf16.xpose.msra.mxu0 0
        %852 = vmatprep.subr.bf16.mxu0 0
        %853 = vmatpush2.bf16.xpose.msra.mxu0 0
        %854 = vmatprep.subr.bf16.mxu0 0
        %855 = vmatpush2.bf16.xpose.msra.mxu0 0
        %856 = vmatprep.subr.bf16.mxu0 0
        %857 = vmatpush2.bf16.xpose.msra.mxu0 0
        %858 = vmatprep.subr.bf16.mxu0 0
        %859 = vmatpush2.bf16.xpose.msra.mxu0 0
        %860 = vmatprep.mubr.bf16.mxu0 0
        %861 = vmatmul.mubr.bf16.gmra.mxu0 %v823
        %v862 = vpop.f32.mrf.mxu0
        %v863 = vadd.f32 0.0, %v862
        %v864 = vpop.f32.mrf.mxu0
        %v865 = vpop.f32.mrf.mxu0
        %v866 = vpop.f32.mrf.mxu0
        %867 = vdwg.mxu0
        %v868 = vsel %vm572, %v863, -inf
        %869 = vmax.xlane.f32.xlu0 %v868
        %v870 = vpop.xlane.xlu0 %869
        %v871 = vsub.f32 %v863, %v870
        %v872 = vpack.c.bf16 %v871, %v871
        %v874 = vmul.bf16 %v872, 1069105081
        %v875 = vpow.bf16.pop %v874
        %v876 = vunpack.c.l.bf16 %v875
        %v877 = vsel %vm572, %v876, 0.0
        %878 = vadd.xlane.f32.xlu0 %v877
        %v879 = vpop.xlane.xlu0 %878
        %v881 = vunpack.c.l.b16 %v814
        %v882 = vpack.c.b16 %v881, %v881
        %883 = vrot.lane.b32.xlu0 %v882, 112
        %v884 = vpop.permute.xlu0 %883
        %v886 = vsel %vm572, %v875, 0
        %v889 = vsel %vm634, %v884, 0
        %891 = vmatprep.subr.bf16.mxu0 0
        %892 = vmatpush1.bf16.msra.mxu0 0
        %893 = vmatprep.subr.bf16.mxu0 0
        %894 = vmatpush1.bf16.msra.mxu0 0
        %895 = vmatprep.subr.bf16.mxu0 0
        %896 = vmatpush1.bf16.msra.mxu0 0
        %897 = vmatprep.subr.bf16.mxu0 0
        %898 = vmatpush1.bf16.msra.mxu0 0
        %899 = vmatprep.subr.bf16.mxu0 0
        %900 = vmatpush1.bf16.msra.mxu0 0
        %901 = vmatprep.subr.bf16.mxu0 0
        %902 = vmatpush1.bf16.msra.mxu0 0
        %903 = vmatprep.subr.bf16.mxu0 0
        %904 = vmatpush1.bf16.msra.mxu0 0
        %905 = vmatprep.subr.bf16.mxu0 0
        %906 = vmatpush1.bf16.msra.mxu0 %v889
        %907 = vmatprep.subr.bf16.mxu0 0
        %908 = vmatpush2.bf16.msra.mxu0 0
        %909 = vmatprep.subr.bf16.mxu0 0
        %910 = vmatpush2.bf16.msra.mxu0 0
        %911 = vmatprep.subr.bf16.mxu0 0
        %912 = vmatpush2.bf16.msra.mxu0 0
        %913 = vmatprep.subr.bf16.mxu0 0
        %914 = vmatpush2.bf16.msra.mxu0 0
        %915 = vmatprep.subr.bf16.mxu0 0
        %916 = vmatpush2.bf16.msra.mxu0 0
        %917 = vmatprep.subr.bf16.mxu0 0
        %918 = vmatpush2.bf16.msra.mxu0 0
        %919 = vmatprep.subr.bf16.mxu0 0
        %920 = vmatpush2.bf16.msra.mxu0 0
        %921 = vmatprep.subr.bf16.mxu0 0
        %922 = vmatpush2.bf16.msra.mxu0 0
        %923 = vmatprep.mubr.bf16.mxu0 0
        %924 = vmatmul.mubr.bf16.gmra.mxu0 %v886
        %v925 = vpop.f32.mrf.mxu0
        %v926 = vadd.f32 0.0, %v925
        %v927 = vpop.f32.mrf.mxu0
        %v928 = vpop.f32.mrf.mxu0
        %v929 = vpop.f32.mrf.mxu0
        %930 = vdwg.mxu0
        %v931 = vrcp.pop %v879
        %v932 = vmul.f32 %v926, %v931
        %v933 = vpack.c.bf16 %v932, %v932
        %v935 = vunpack.c.l.b16 %v933
        %v936 = vpack.c.b16 %v935, %v935
        %937 = vrot.lane.b32.xlu0 %v936, 16
        %v938 = vpop.permute.xlu0 %937
        %vm940 = vcmask 191616
        %941 = vst.msk [vmem:[#allocation4] sm:$0xf] %vm940, %v938
        %v942 = vld [vmem:[#allocation2] sm:$0xf]
        %v943 = vld [vmem:[#allocation3] sm:$0xf]
        %944 = vrot.lane.b32.xlu0 %v569, 104
        %v945 = vpop.permute.xlu0 %944
        %v947 = vunpack.c.l.b16 %v942
        %v948 = vpack.c.b16 %v947, %v947
        %949 = vrot.lane.b32.xlu0 %v948, 104
        %v950 = vpop.permute.xlu0 %949
        %v952 = vsel %vm572, %v945, 0
        %v955 = vsel %vm572, %v950, 0
        %957 = vmatprep.subr.bf16.mxu0 0
        %958 = vmatpush1.bf16.xpose.msra.mxu0 0
        %959 = vmatprep.subr.bf16.mxu0 0
        %960 = vmatpush1.bf16.xpose.msra.mxu0 0
        %961 = vmatprep.subr.bf16.mxu0 0
        %962 = vmatpush1.bf16.xpose.msra.mxu0 0
        %963 = vmatprep.subr.bf16.mxu0 0
        %964 = vmatpush1.bf16.xpose.msra.mxu0 0
        %965 = vmatprep.subr.bf16.mxu0 0
        %966 = vmatpush1.bf16.xpose.msra.mxu0 0
        %967 = vmatprep.subr.bf16.mxu0 0
        %968 = vmatpush1.bf16.xpose.msra.mxu0 0
        %969 = vmatprep.subr.bf16.mxu0 0
        %970 = vmatpush1.bf16.xpose.msra.mxu0 0
        %971 = vmatprep.subr.bf16.mxu0 0
        %972 = vmatpush1.bf16.xpose.msra.mxu0 %v955
        %973 = vmatprep.subr.bf16.mxu0 0
        %974 = vmatpush2.bf16.xpose.msra.mxu0 0
        %975 = vmatprep.subr.bf16.mxu0 0
        %976 = vmatpush2.bf16.xpose.msra.mxu0 0
        %977 = vmatprep.subr.bf16.mxu0 0
        %978 = vmatpush2.bf16.xpose.msra.mxu0 0
        %979 = vmatprep.subr.bf16.mxu0 0
        %980 = vmatpush2.bf16.xpose.msra.mxu0 0
        %981 = vmatprep.subr.bf16.mxu0 0
        %982 = vmatpush2.bf16.xpose.msra.mxu0 0
        %983 = vmatprep.subr.bf16.mxu0 0
        %984 = vmatpush2.bf16.xpose.msra.mxu0 0
        %985 = vmatprep.subr.bf16.mxu0 0
        %986 = vmatpush2.bf16.xpose.msra.mxu0 0
        %987 = vmatprep.subr.bf16.mxu0 0
        %988 = vmatpush2.bf16.xpose.msra.mxu0 0
        %989 = vmatprep.mubr.bf16.mxu0 0
        %990 = vmatmul.mubr.bf16.gmra.mxu0 %v952
        %v991 = vpop.f32.mrf.mxu0
        %v992 = vadd.f32 0.0, %v991
        %v993 = vpop.f32.mrf.mxu0
        %v994 = vpop.f32.mrf.mxu0
        %v995 = vpop.f32.mrf.mxu0
        %996 = vdwg.mxu0
        %v997 = vsel %vm572, %v992, -inf
        %998 = vmax.xlane.f32.xlu0 %v997
        %v999 = vpop.xlane.xlu0 %998
        %v1000 = vsub.f32 %v992, %v999
        %v1001 = vpack.c.bf16 %v1000, %v1000
        %v1003 = vmul.bf16 %v1001, 1069105081
        %v1004 = vpow.bf16.pop %v1003
        %v1005 = vunpack.c.l.bf16 %v1004
        %v1006 = vsel %vm572, %v1005, 0.0
        %1007 = vadd.xlane.f32.xlu0 %v1006
        %v1008 = vpop.xlane.xlu0 %1007
        %v1010 = vunpack.c.l.b16 %v943
        %v1011 = vpack.c.b16 %v1010, %v1010
        %1012 = vrot.lane.b32.xlu0 %v1011, 104
        %v1013 = vpop.permute.xlu0 %1012
        %v1015 = vsel %vm572, %v1004, 0
        %v1018 = vsel %vm634, %v1013, 0
        %1020 = vmatprep.subr.bf16.mxu0 0
        %1021 = vmatpush1.bf16.msra.mxu0 0
        %1022 = vmatprep.subr.bf16.mxu0 0
        %1023 = vmatpush1.bf16.msra.mxu0 0
        %1024 = vmatprep.subr.bf16.mxu0 0
        %1025 = vmatpush1.bf16.msra.mxu0 0
        %1026 = vmatprep.subr.bf16.mxu0 0
        %1027 = vmatpush1.bf16.msra.mxu0 0
        %1028 = vmatprep.subr.bf16.mxu0 0
        %1029 = vmatpush1.bf16.msra.mxu0 0
        %1030 = vmatprep.subr.bf16.mxu0 0
        %1031 = vmatpush1.bf16.msra.mxu0 0
        %1032 = vmatprep.subr.bf16.mxu0 0
        %1033 = vmatpush1.bf16.msra.mxu0 0
        %1034 = vmatprep.subr.bf16.mxu0 0
        %1035 = vmatpush1.bf16.msra.mxu0 %v1018
        %1036 = vmatprep.subr.bf16.mxu0 0
        %1037 = vmatpush2.bf16.msra.mxu0 0
        %1038 = vmatprep.subr.bf16.mxu0 0
        %1039 = vmatpush2.bf16.msra.mxu0 0
        %1040 = vmatprep.subr.bf16.mxu0 0
        %1041 = vmatpush2.bf16.msra.mxu0 0
        %1042 = vmatprep.subr.bf16.mxu0 0
        %1043 = vmatpush2.bf16.msra.mxu0 0
        %1044 = vmatprep.subr.bf16.mxu0 0
        %1045 = vmatpush2.bf16.msra.mxu0 0
        %1046 = vmatprep.subr.bf16.mxu0 0
        %1047 = vmatpush2.bf16.msra.mxu0 0
        %1048 = vmatprep.subr.bf16.mxu0 0
        %1049 = vmatpush2.bf16.msra.mxu0 0
        %1050 = vmatprep.subr.bf16.mxu0 0
        %1051 = vmatpush2.bf16.msra.mxu0 0
        %1052 = vmatprep.mubr.bf16.mxu0 0
        %1053 = vmatmul.mubr.bf16.gmra.mxu0 %v1015
        %v1054 = vpop.f32.mrf.mxu0
        %v1055 = vadd.f32 0.0, %v1054
        %v1056 = vpop.f32.mrf.mxu0
        %v1057 = vpop.f32.mrf.mxu0
        %v1058 = vpop.f32.mrf.mxu0
        %1059 = vdwg.mxu0
        %v1060 = vrcp.pop %v1008
        %v1061 = vmul.f32 %v1055, %v1060
        %v1062 = vpack.c.bf16 %v1061, %v1061
        %v1064 = vunpack.c.l.b16 %v1062
        %v1065 = vpack.c.b16 %v1064, %v1064
        %1066 = vrot.lane.b32.xlu0 %v1065, 24
        %v1067 = vpop.permute.xlu0 %1066
        %vm1069 = vcmask 257216
        %1070 = vst.msk [vmem:[#allocation4] sm:$0xf] %vm1069, %v1067
        %v1071 = vld [vmem:[#allocation4] sm:$0xf]
        %v1072 = vld [vmem:[#allocation13] sm:$0xf]
        %v1073 = vld [vmem:[#allocation13 + $0x4] sm:$0xf]
        %v1074 = vld [vmem:[#allocation13 + $0x8] sm:$0xf]
        %v1075 = vld [vmem:[#allocation13 + $0xc] sm:$0xf]
        %v1076 = vld [vmem:[%s7] sm:$0x1]
        %v1078 = vlaneseq
        %v1079 = vshrl.u32 %v1078, 7
        %v1080 = vsub.s32 0, %v1079
        %v1081 = vrot.slane %v1076, %v1080
        %v1087 = vunpack.c.l.b16 %v1072
        %v1088 = vunpack.c.l.b16 %v1073
        %v1089 = vunpack.c.l.b16 %v1074
        %v1090 = vunpack.c.l.b16 %v1075
        %v1091 = vpack.c.b16 %v1088, %v1087
        %v1092 = vpack.c.b16 %v1090, %v1089
        %v1096 = vsel %vm525, %v1071, 0
        %1098 = vmatprep.subr.bf16.mxu0 0
        %1099 = vmatpush1.bf16.msra.mxu0 0
        %1100 = vmatprep.subr.bf16.mxu0 0
        %1101 = vmatpush1.bf16.msra.mxu0 0
        %1102 = vmatprep.subr.bf16.mxu0 0
        %1103 = vmatpush1.bf16.msra.mxu0 0
        %1104 = vmatprep.subr.bf16.mxu0 0
        %1105 = vmatpush1.bf16.msra.mxu0 0
        %1106 = vmatprep.subr.bf16.mxu0 0
        %1107 = vmatpush1.bf16.msra.mxu0 0
        %1108 = vmatprep.subr.bf16.mxu0 0
        %1109 = vmatpush1.bf16.msra.mxu0 0
        %1110 = vmatprep.subr.bf16.mxu0 0
        %1111 = vmatpush1.bf16.msra.mxu0 %v1092
        %1112 = vmatprep.subr.bf16.mxu0 0
        %1113 = vmatpush1.bf16.msra.mxu0 %v1091
        %1114 = vmatprep.subr.bf16.mxu0 0
        %1115 = vmatpush2.bf16.msra.mxu0 0
        %1116 = vmatprep.subr.bf16.mxu0 0
        %1117 = vmatpush2.bf16.msra.mxu0 0
        %1118 = vmatprep.subr.bf16.mxu0 0
        %1119 = vmatpush2.bf16.msra.mxu0 0
        %1120 = vmatprep.subr.bf16.mxu0 0
        %1121 = vmatpush2.bf16.msra.mxu0 0
        %1122 = vmatprep.subr.bf16.mxu0 0
        %1123 = vmatpush2.bf16.msra.mxu0 0
        %1124 = vmatprep.subr.bf16.mxu0 0
        %1125 = vmatpush2.bf16.msra.mxu0 0
        %1126 = vmatprep.subr.bf16.mxu0 0
        %1127 = vmatpush2.bf16.msra.mxu0 0
        %1128 = vmatprep.subr.bf16.mxu0 0
        %1129 = vmatpush2.bf16.msra.mxu0 0
        %1130 = vmatprep.mubr.bf16.mxu0 0
        %1131 = vmatmul.mubr.bf16.gmra.mxu0 %v1096
        %v1132 = vpop.f32.mrf.mxu0
        %v1133 = vadd.f32 %v1081, %v1132
        %v1134 = vpop.f32.mrf.mxu0
        %v1135 = vpop.f32.mrf.mxu0
        %v1136 = vpop.f32.mrf.mxu0
        %1137 = vdwg.mxu0
        %v1138 = vpack.c.bf16 %v1133, %v1133
        %vm1139 = vcmask 257024
        %1140 = vst.msk [vmem:[%s417] sm:$0xf] %vm1139, %v1138
        %s1141 = sand.u32 %s231, 1
        %s1142 = scalar_lea.sflag [#allocation7], %s1141
        %s1143 = sand.u32 %s231, 1
        %s1144 = smul.addr %s1143, 4
        %s1145 = scalar_lea.vmem [#allocation14], %s1144
        // Predicated region
        $region77: #{tpu_custom_call.1} parent=51 // pred_check
          %p1146 = pneg %p241
        $region78: #{tpu_custom_call.1} parent=51 // pred_check_branch
          %1148 = sbr.rel (%p1146) target = $region80
        $region79: #{tpu_custom_call.1} parent=51 // pred_region
          %s1150 = ssub.s32 64, 64
          %1151 = vsyncadd %s1142, %s1150
          %s1152 = sadd.s32 %s34, %s33
          %s1153 = smul.addr %s1152, 64
          %s1154 = scalar_lea.hbm %s8, %s1153
          %s1156 = sshll.u32 %s1145, 4
          %s1157 = int_to_ptr.vmem [resolvable:$true] %s1156
          %1159 = dma.vmem_to_hbm [thread:$0]  %s1157, 64, %s1154, %s1142
        $region80: #{tpu_custom_call.1} parent=51 // pred_fallthru
          _
      $region52: #{tpu_custom_call.1} parent=5 // pred_fallthru
        _
      %p1160 = scmp.le.s32.totalorder 2, %s24
      // Predicated region
      $region81: #{tpu_custom_call.1} parent=5 // pred_check
        %p1161 = pneg %p1160
      $region82: #{tpu_custom_call.1} parent=5 // pred_check_branch
        %1163 = sbr.rel (%p1161) target = $region84
      $region83: #{tpu_custom_call.1} parent=5 // pred_region
        %s1164 = ssub.s32 %s24, 2
        // Predicated region
        $region85: #{tpu_custom_call.1} parent=83 // pred_check
          %p1165 = pneg %p247
        $region86: #{tpu_custom_call.1} parent=83 // pred_check_branch
          %1167 = sbr.rel (%p1165) target = $region88
        $region87: #{tpu_custom_call.1} parent=83 // pred_region
          %s1168 = sand.u32 %s232, 1
          %s1169 = scalar_lea.sflag [#allocation7], %s1168
          %s1170 = sand.u32 %s232, 1
          %s1171 = smul.addr %s1170, 4
          %s1172 = scalar_lea.vmem [#allocation14], %s1171
          %1173 = dma.done %s1169, 64
        $region88: #{tpu_custom_call.1} parent=83 // pred_fallthru
          _
      $region84: #{tpu_custom_call.1} parent=5 // pred_fallthru
        _
    $region6: #{tpu_custom_call.1} parent=1 // loop_footer
      %s28 = sadd.s32 1, %s24
    $region7: #{tpu_custom_call.1} parent=1 // loop_footer_branch
      %23 = sbr.rel target = $region3
    $region8: #{tpu_custom_call.1} parent=1 // loop_exit
      _
    %1174 = vsyncpa [#allocation6], 1
    %s1175 = scalar_lea.sflag [#allocation6], 1
    %1176 = vsyncpa %s1175, 1
    %1177 = vsyncpa [#allocation9], 1
    %s1178 = scalar_lea.sflag [#allocation9], 1
    %1179 = vsyncpa %s1178, 1
    %1180 = vsyncpa [#allocation12], 1
    %1181 = vsyncpa [#allocation7], 1
    %s1182 = scalar_lea.sflag [#allocation7], 1
    %1183 = vsyncpa %s1182, 1

</llo_original>
